<compile_context>
chip_gen: v7x
topology: tpu7x:2x2x1
jax: 0.10.0
libtpu: 0.0.40
codegen_flags: <defaults>
</compile_context>

<pallas_src>
import functools

import jax
import jax.numpy as jnp
from jax import lax
from jax.experimental import pallas as pl
from jax.experimental.pallas import tpu as pltpu

DROP_P = 0.3
NEG_SLOPE = 0.2       # PyG GATConv default LeakyReLU slope
NEG_INF = -1e9
OUT_LANES = 128       # lane-dense padded output / bias-slab width
W_LANES = 256         # lane width of the packed weight slab


def _attend(d_col, s_col, z_head, edge_mask, ones_col):
    """Masked single-head dense GAT attention.

    d_col, s_col: (N,1) f32 dst/src scores; z_head: (N,H) f32 projected features;
    edge_mask: (N,N) bool, True where edge j->i exists (self-loops included).
    """
    # e[i, j] = d[i] + s[j] as a rank-2 MXU outer product (no XLU transpose of s).
    lhs = jnp.concatenate([d_col, ones_col], axis=1)           # (N, 2)
    rhs = jnp.concatenate([ones_col, s_col], axis=1)           # (N, 2)
    e = lax.dot_general(lhs, rhs, (((1,), (1,)), ((), ())),
                        preferred_element_type=jnp.float32)    # (N, N)
    e = jnp.where(e > 0, e, NEG_SLOPE * e)                     # LeakyReLU(0.2)
    e = jnp.where(edge_mask, e, NEG_INF)                       # mask non-edges
    e = e - jnp.max(e, axis=-1, keepdims=True)
    p = jnp.exp(e)
    denom = jnp.sum(p, axis=-1, keepdims=True)                 # (N, 1)
    acc = jnp.dot(p.astype(jnp.bfloat16), z_head.astype(jnp.bfloat16),
                  preferred_element_type=jnp.float32)          # unnormalized P @ Z
    return acc * pl.reciprocal(denom, approx=True)             # deferred softmax scale


def _gat_kernel(adj_ref, x_ref, dm_ref, w_ref, b_ref, out_ref, *, cin, hid):
    f32, bf16 = jnp.float32, jnp.bfloat16
    n = adj_ref.shape[1]

    edge_mask = adj_ref[0].astype(f32) > 0.0          # (N, N) bool
    x = x_ref[0].astype(bf16)                         # (N, cin)
    dm = dm_ref[0]                                    # (2, N, hid) inverted-dropout scales
    ones_col = jnp.ones((n, 1), f32)

    # Packed weight-slab row offsets (static).
    r1 = cin                  # end of w1_aug
    r2 = r1 + hid             # end of w2_aug top half
    r3 = r2 + hid             # end of w2_aug bottom half
    r4 = r3 + hid             # end of w_lin

    # ---- GATConv1 (2 heads, concat): one matmul gives features + [s0,d0,s1,d1] scores. ----
    z1 = jnp.dot(x, w_ref[0:r1, :], preferred_element_type=f32)          # (N, W_LANES)
    sc = 2 * hid
    ha = _attend(z1[:, sc + 1:sc + 2], z1[:, sc:sc + 1], z1[:, :hid],
                 edge_mask, ones_col)
    hb = _attend(z1[:, sc + 3:sc + 4], z1[:, sc + 2:sc + 3], z1[:, hid:2 * hid],
                 edge_mask, ones_col)

    # Per-head bias + ReLU + dropout (W2 is split host-side to avoid a 64-lane concat).
    ha = jnp.maximum(ha + b_ref[0:1, :hid], 0.0) * dm[0]
    hb = jnp.maximum(hb + b_ref[1:2, :hid], 0.0) * dm[1]

    # ---- GATConv2 (1 head): split-W2 fused matmuls give features + [s,d] scores. ----
    z2 = (jnp.dot(ha.astype(bf16), w_ref[r1:r2, :], preferred_element_type=f32)
          + jnp.dot(hb.astype(bf16), w_ref[r2:r3, :], preferred_element_type=f32))
    h2 = _attend(z2[:, hid + 1:hid + 2], z2[:, hid:hid + 1], z2[:, :hid],
                 edge_mask, ones_col)
    h2 = jnp.maximum(h2 + b_ref[2:3, :hid], 0.0)

    # ---- Final Linear (lane-dense 128-wide padded output). ----
    out = jnp.dot(h2.astype(bf16), w_ref[r3:r4, :], preferred_element_type=f32)
    out_ref[0] = (out[:, :OUT_LANES] + b_ref[3:4, :]).astype(out_ref.dtype)


@functools.partial(jax.jit, static_argnames=("out_channels",))
def gat_forward(x, adj, dropout_mask, w_slab, b_slab, out_channels):
    """x: (B,N,Cin) f32; adj: (B,N,N) int8 (1 where edge j->i, self-loops included);
    dropout_mask: (B,2,N,hid) f32 inverted-dropout scales (pass ones for inference)."""
    b, n, cin = x.shape
    hid = dropout_mask.shape[-1]
    kernel = functools.partial(_gat_kernel, cin=cin, hid=hid)
    out = pl.pallas_call(
        kernel,
        out_shape=jax.ShapeDtypeStruct((b, n, OUT_LANES), jnp.float32),
        grid_spec=pltpu.PrefetchScalarGridSpec(
            num_scalar_prefetch=0,
            grid=(b,),
            in_specs=[
                pl.BlockSpec((1, n, n), lambda i: (i, 0, 0)),          # int8 adjacency
                pl.BlockSpec((1, n, cin), lambda i: (i, 0, 0)),        # node features
                pl.BlockSpec((1, 2, n, hid), lambda i: (i, 0, 0, 0)),  # dropout mask
                pl.BlockSpec(w_slab.shape, lambda i: (0, 0)),          # packed bf16 weights
                pl.BlockSpec(b_slab.shape, lambda i: (0, 0)),          # packed f32 biases
            ],
            out_specs=pl.BlockSpec((1, n, OUT_LANES), lambda i: (i, 0, 0)),
        ),
        compiler_params=pltpu.CompilerParams(
            dimension_semantics=("parallel",)),   # graphs shard across TensorCores on v7x
    )(adj, x, dropout_mask, w_slab, b_slab)
    return out[:, :, :out_channels]


def build_adjacency(edge_index, num_nodes):
    """(N, N) int8: adj[i, j] = 1 iff edge j->i exists (self-loops added, as in PyG GATConv)."""
    src, dst = edge_index[0], edge_index[1]
    adj = jnp.zeros((num_nodes, num_nodes), jnp.int8).at[dst, src].set(1)
    idx = jnp.arange(num_nodes)
    return adj.at[idx, idx].set(1)


def init_params(key, in_channels, hidden_channels, out_channels, heads=2):
    assert heads == 2, "kernel is specialized to the module's heads=2"
    hid = hidden_channels
    assert heads * hid + 2 * heads <= W_LANES and hid + 2 <= W_LANES
    assert hid <= OUT_LANES and out_channels <= OUT_LANES
    ks = jax.random.split(key, 8)

    def glorot(k, shape):
        s = jnp.sqrt(6.0 / (shape[0] + shape[1]))
        return jax.random.uniform(k, shape, jnp.float32, -s, s)

    # GATConv1 (heads=2, concat): lin (Cin, 2*hid) no bias in lin; att_src/att_dst (heads, hid).
    w1 = glorot(ks[0], (in_channels, heads * hid))
    att_src1 = glorot(ks[1], (heads, hid))
    att_dst1 = glorot(ks[2], (heads, hid))
    b1 = jnp.zeros((heads * hid,), jnp.float32)            # PyG init: zeros
    # Fold per-head attention scores into the projection (trailing cols [s0,d0,s1,d1]).
    score_cols = []
    for h in range(heads):
        wh = w1[:, h * hid:(h + 1) * hid]
        score_cols += [wh @ att_src1[h], wh @ att_dst1[h]]
    w1_aug = jnp.concatenate([w1] + [c[:, None] for c in score_cols], axis=1)

    # GATConv2 (1 head).
    w2 = glorot(ks[3], (heads * hid, hid))
    att_src2 = glorot(ks[4], (1, hid))[0]
    att_dst2 = glorot(ks[5], (1, hid))[0]
    b2 = jnp.zeros((hid,), jnp.float32)
    w2_aug = jnp.concatenate(
        [w2, (w2 @ att_src2)[:, None], (w2 @ att_dst2)[:, None]], axis=1)

    # Final Linear (PyTorch default uniform init).
    lim = 1.0 / float(hid) ** 0.5
    w_lin = jax.random.uniform(ks[6], (hid, out_channels), jnp.float32, -lim, lim)
    b_lin = jax.random.uniform(ks[7], (out_channels,), jnp.float32, -lim, lim)

    def pad_lanes(m):
        return jnp.zeros((m.shape[0], W_LANES), jnp.float32).at[:, :m.shape[1]].set(m)

    # One bf16 weight slab: [w1_aug ; w2_aug_top ; w2_aug_bot ; w_lin], padded to 256 lanes.
    w_slab = jnp.concatenate(
        [pad_lanes(w1_aug), pad_lanes(w2_aug[:hid]), pad_lanes(w2_aug[hid:]),
         pad_lanes(w_lin)], axis=0).astype(jnp.bfloat16)

    # One f32 bias slab: rows [b1_head0, b1_head1, b2, b_lin], padded to (8, 128).
    b_slab = jnp.zeros((8, OUT_LANES), jnp.float32)
    b_slab = b_slab.at[0, :hid].set(b1[:hid])
    b_slab = b_slab.at[1, :hid].set(b1[hid:])
    b_slab = b_slab.at[2, :hid].set(b2)
    b_slab = b_slab.at[3, :out_channels].set(b_lin)
    return w_slab, b_slab


if __name__ == "__main__":
    key = jax.random.PRNGKey(0)
    k_x, k_p, k_drop = jax.random.split(key, 3)

    B = 2            # batch of graphs -> parallel grid axis (both TCs on v7x)
    N = 64           # nodes per graph
    IN_C = 16        # in_channels
    HID_C = 64       # hidden_channels (heads*hidden = 128 -> lane-dense)
    OUT_C = 8        # out_channels
    HEADS = 2

    x = jax.random.normal(k_x, (B, N, IN_C), jnp.float32)

    # Deterministic synthetic directed graphs: ring + skip-k edges, (2, 2N) each.
    def ring_graph(skip):
        src = jnp.concatenate([jnp.arange(N), jnp.arange(N)])
        dst = jnp.concatenate([(jnp.arange(N) + 1) % N, (jnp.arange(N) + skip) % N])
        return jnp.stack([src, dst]).astype(jnp.int32)

    adj = jnp.stack([build_adjacency(ring_graph(5), N),
                     build_adjacency(ring_graph(9), N)])

    w_slab, b_slab = init_params(k_p, IN_C, HID_C, OUT_C, heads=HEADS)

    # Inverted-dropout mask (training mode; not bit-matched to torch RNG; pass ones for eval).
    keep = jax.random.bernoulli(k_drop, 1.0 - DROP_P, (B, HEADS, N, HID_C))
    dropout_mask = keep.astype(jnp.float32) / (1.0 - DROP_P)

    out = gat_forward(x, adj, dropout_mask, w_slab, b_slab, out_channels=OUT_C)
    jax.block_until_ready(out)
    assert out.shape == (B, N, OUT_C), out.shape
    assert bool(jnp.all(jnp.isfinite(out)))
    print("KERNEL_OK")
</pallas_src>

<mosaic_0001>
module attributes {stable_mosaic.version = 11 : i64} {
  func.func @_gat_kernel(%arg0: i32, %arg1: memref<1x64x64xi8, #tpu.memory_space<vmem>>, %arg2: memref<1x64x16xf32, #tpu.memory_space<vmem>>, %arg3: memref<1x2x64x64xf32, #tpu.memory_space<vmem>>, %arg4: memref<208x256xbf16, #tpu.memory_space<vmem>>, %arg5: memref<8x128xf32, #tpu.memory_space<vmem>>, %arg6: memref<1x64x128xf32, #tpu.memory_space<vmem>>) attributes {dimension_semantics = [#tpu.dimension_semantics<parallel>], iteration_bounds = array<i64: 2>, scalar_prefetch = 0 : i64, scratch_operands = 0 : i64, tpu.core_type = #tpu.core_type<tc>, window_params = [{transform_indices = @transform_0, window_bounds = array<i64: 1, 64, 64>}, {transform_indices = @transform_1, window_bounds = array<i64: 1, 64, 16>}, {transform_indices = @transform_2, window_bounds = array<i64: 1, 2, 64, 64>}, {pipeline_mode = #tpu.pipeline_mode<synchronous>, transform_indices = @transform_3, window_bounds = array<i64: 208, 256>}, {pipeline_mode = #tpu.pipeline_mode<synchronous>, transform_indices = @transform_4, window_bounds = array<i64: 8, 128>}, {transform_indices = @transform_5, window_bounds = array<i64: 1, 64, 128>}]} {
    %c0 = arith.constant 0 : index
    %c0_0 = arith.constant 0 : index
    %c0_1 = arith.constant 0 : index
    %0 = vector.load %arg1[%c0, %c0_0, %c0_1] : memref<1x64x64xi8, #tpu.memory_space<vmem>>, vector<1x64x64xi8>
    %1 = vector.shape_cast %0 : vector<1x64x64xi8> to vector<64x64xi8>
    %2 = arith.sitofp %1 : vector<64x64xi8> to vector<64x64xf32>
    %cst = arith.constant 0.000000e+00 : f32
    %3 = vector.broadcast %cst : f32 to vector<64x64xf32>
    %4 = arith.cmpf ogt, %2, %3 : vector<64x64xf32>
    %c0_2 = arith.constant 0 : index
    %c0_3 = arith.constant 0 : index
    %c0_4 = arith.constant 0 : index
    %5 = vector.load %arg2[%c0_2, %c0_3, %c0_4] : memref<1x64x16xf32, #tpu.memory_space<vmem>>, vector<1x64x16xf32>
    %6 = vector.shape_cast %5 : vector<1x64x16xf32> to vector<64x16xf32>
    %7 = arith.truncf %6 : vector<64x16xf32> to vector<64x16xbf16>
    %c0_5 = arith.constant 0 : index
    %c0_6 = arith.constant 0 : index
    %c0_7 = arith.constant 0 : index
    %c0_8 = arith.constant 0 : index
    %8 = vector.load %arg3[%c0_5, %c0_6, %c0_7, %c0_8] : memref<1x2x64x64xf32, #tpu.memory_space<vmem>>, vector<1x2x64x64xf32>
    %9 = vector.shape_cast %8 : vector<1x2x64x64xf32> to vector<2x64x64xf32>
    %cst_9 = arith.constant 1.000000e+00 : f32
    %10 = vector.broadcast %cst_9 : f32 to vector<64x1xf32>
    %c0_10 = arith.constant 0 : index
    %c0_11 = arith.constant 0 : index
    %11 = vector.load %arg4[%c0_10, %c0_11] : memref<208x256xbf16, #tpu.memory_space<vmem>>, vector<16x256xbf16>
    %cst_12 = arith.constant dense<0.000000e+00> : vector<64x256xf32>
    %12 = tpu.matmul %7, %11, %cst_12 {dimension_numbers = #tpu.dot_dimension_numbers<[1], [0], [0], [1], [0, 0, 1, 1], [], []>} : vector<64x16xbf16>, vector<16x256xbf16>, vector<64x256xf32> -> vector<64x256xf32>
    %13 = vector.extract_strided_slice %12 {offsets = [0, 129], sizes = [64, 1], strides = [1, 1]} : vector<64x256xf32> to vector<64x1xf32>
    %14 = vector.extract_strided_slice %12 {offsets = [0, 128], sizes = [64, 1], strides = [1, 1]} : vector<64x256xf32> to vector<64x1xf32>
    %15 = vector.extract_strided_slice %12 {offsets = [0, 0], sizes = [64, 64], strides = [1, 1]} : vector<64x256xf32> to vector<64x64xf32>
    %16 = tpu.concatenate %13, %10 in 1 : vector<64x1xf32>, vector<64x1xf32> -> vector<64x2xf32>
    %17 = tpu.concatenate %10, %14 in 1 : vector<64x1xf32>, vector<64x1xf32> -> vector<64x2xf32>
    %cst_13 = arith.constant dense<0.000000e+00> : vector<64x64xf32>
    %18 = tpu.matmul %16, %17, %cst_13 {dimension_numbers = #tpu.dot_dimension_numbers<[1], [1], [0], [0], [0, 0, 1, 0], [], []>} : vector<64x2xf32>, vector<64x2xf32>, vector<64x64xf32> -> vector<64x64xf32>
    %cst_14 = arith.constant 0.000000e+00 : f32
    %19 = vector.broadcast %cst_14 : f32 to vector<64x64xf32>
    %20 = arith.cmpf ogt, %18, %19 : vector<64x64xf32>
    %cst_15 = arith.constant 2.000000e-01 : f32
    %21 = vector.broadcast %cst_15 : f32 to vector<64x64xf32>
    %22 = arith.mulf %21, %18 : vector<64x64xf32>
    %23 = arith.select %20, %18, %22 : vector<64x64xi1>, vector<64x64xf32>
    %cst_16 = arith.constant -1.000000e+09 : f32
    %24 = vector.broadcast %cst_16 : f32 to vector<64x64xf32>
    %25 = arith.select %4, %23, %24 : vector<64x64xi1>, vector<64x64xf32>
    %cst_17 = arith.constant dense<0xFF800000> : vector<64xf32>
    %26 = vector.multi_reduction <maximumf>, %25, %cst_17 [1] : vector<64x64xf32> to vector<64xf32>
    %27 = vector.shape_cast %26 : vector<64xf32> to vector<64x1xf32>
    %28 = vector.broadcast %27 : vector<64x1xf32> to vector<64x64xf32>
    %29 = arith.subf %25, %28 : vector<64x64xf32>
    %30 = math.exp %29 : vector<64x64xf32>
    %cst_18 = arith.constant dense<0.000000e+00> : vector<64xf32>
    %31 = vector.multi_reduction <add>, %30, %cst_18 [1] : vector<64x64xf32> to vector<64xf32>
    %32 = vector.shape_cast %31 : vector<64xf32> to vector<64x1xf32>
    %33 = arith.truncf %30 : vector<64x64xf32> to vector<64x64xbf16>
    %34 = arith.truncf %15 : vector<64x64xf32> to vector<64x64xbf16>
    %cst_19 = arith.constant dense<0.000000e+00> : vector<64x64xf32>
    %35 = tpu.matmul %33, %34, %cst_19 {dimension_numbers = #tpu.dot_dimension_numbers<[1], [0], [0], [1], [0, 0, 1, 1], [], []>} : vector<64x64xbf16>, vector<64x64xbf16>, vector<64x64xf32> -> vector<64x64xf32>
    %36 = tpu.reciprocal %32 {approx = true} : vector<64x1xf32> -> vector<64x1xf32>
    %37 = vector.broadcast %36 : vector<64x1xf32> to vector<64x64xf32>
    %38 = arith.mulf %35, %37 : vector<64x64xf32>
    %39 = vector.extract_strided_slice %12 {offsets = [0, 131], sizes = [64, 1], strides = [1, 1]} : vector<64x256xf32> to vector<64x1xf32>
    %40 = vector.extract_strided_slice %12 {offsets = [0, 130], sizes = [64, 1], strides = [1, 1]} : vector<64x256xf32> to vector<64x1xf32>
    %41 = vector.extract_strided_slice %12 {offsets = [0, 64], sizes = [64, 64], strides = [1, 1]} : vector<64x256xf32> to vector<64x64xf32>
    %42 = tpu.concatenate %39, %10 in 1 : vector<64x1xf32>, vector<64x1xf32> -> vector<64x2xf32>
    %43 = tpu.concatenate %10, %40 in 1 : vector<64x1xf32>, vector<64x1xf32> -> vector<64x2xf32>
    %cst_20 = arith.constant dense<0.000000e+00> : vector<64x64xf32>
    %44 = tpu.matmul %42, %43, %cst_20 {dimension_numbers = #tpu.dot_dimension_numbers<[1], [1], [0], [0], [0, 0, 1, 0], [], []>} : vector<64x2xf32>, vector<64x2xf32>, vector<64x64xf32> -> vector<64x64xf32>
    %cst_21 = arith.constant 0.000000e+00 : f32
    %45 = vector.broadcast %cst_21 : f32 to vector<64x64xf32>
    %46 = arith.cmpf ogt, %44, %45 : vector<64x64xf32>
    %cst_22 = arith.constant 2.000000e-01 : f32
    %47 = vector.broadcast %cst_22 : f32 to vector<64x64xf32>
    %48 = arith.mulf %47, %44 : vector<64x64xf32>
    %49 = arith.select %46, %44, %48 : vector<64x64xi1>, vector<64x64xf32>
    %cst_23 = arith.constant -1.000000e+09 : f32
    %50 = vector.broadcast %cst_23 : f32 to vector<64x64xf32>
    %51 = arith.select %4, %49, %50 : vector<64x64xi1>, vector<64x64xf32>
    %cst_24 = arith.constant dense<0xFF800000> : vector<64xf32>
    %52 = vector.multi_reduction <maximumf>, %51, %cst_24 [1] : vector<64x64xf32> to vector<64xf32>
    %53 = vector.shape_cast %52 : vector<64xf32> to vector<64x1xf32>
    %54 = vector.broadcast %53 : vector<64x1xf32> to vector<64x64xf32>
    %55 = arith.subf %51, %54 : vector<64x64xf32>
    %56 = math.exp %55 : vector<64x64xf32>
    %cst_25 = arith.constant dense<0.000000e+00> : vector<64xf32>
    %57 = vector.multi_reduction <add>, %56, %cst_25 [1] : vector<64x64xf32> to vector<64xf32>
    %58 = vector.shape_cast %57 : vector<64xf32> to vector<64x1xf32>
    %59 = arith.truncf %56 : vector<64x64xf32> to vector<64x64xbf16>
    %60 = arith.truncf %41 : vector<64x64xf32> to vector<64x64xbf16>
    %cst_26 = arith.constant dense<0.000000e+00> : vector<64x64xf32>
    %61 = tpu.matmul %59, %60, %cst_26 {dimension_numbers = #tpu.dot_dimension_numbers<[1], [0], [0], [1], [0, 0, 1, 1], [], []>} : vector<64x64xbf16>, vector<64x64xbf16>, vector<64x64xf32> -> vector<64x64xf32>
    %62 = tpu.reciprocal %58 {approx = true} : vector<64x1xf32> -> vector<64x1xf32>
    %63 = vector.broadcast %62 : vector<64x1xf32> to vector<64x64xf32>
    %64 = arith.mulf %61, %63 : vector<64x64xf32>
    %c0_27 = arith.constant 0 : index
    %c0_28 = arith.constant 0 : index
    %65 = vector.load %arg5[%c0_27, %c0_28] : memref<8x128xf32, #tpu.memory_space<vmem>>, vector<1x64xf32>
    %66 = vector.broadcast %65 : vector<1x64xf32> to vector<64x64xf32>
    %67 = arith.addf %38, %66 : vector<64x64xf32>
    %cst_29 = arith.constant 0.000000e+00 : f32
    %68 = vector.broadcast %cst_29 : f32 to vector<64x64xf32>
    %69 = arith.maximumf %67, %68 : vector<64x64xf32>
    %70 = vector.extract_strided_slice %9 {offsets = [0, 0, 0], sizes = [1, 64, 64], strides = [1, 1, 1]} : vector<2x64x64xf32> to vector<1x64x64xf32>
    %71 = vector.shape_cast %70 : vector<1x64x64xf32> to vector<64x64xf32>
    %72 = arith.mulf %69, %71 : vector<64x64xf32>
    %c1 = arith.constant 1 : index
    %c0_30 = arith.constant 0 : index
    %73 = vector.load %arg5[%c1, %c0_30] : memref<8x128xf32, #tpu.memory_space<vmem>>, vector<1x64xf32>
    %74 = vector.broadcast %73 : vector<1x64xf32> to vector<64x64xf32>
    %75 = arith.addf %64, %74 : vector<64x64xf32>
    %cst_31 = arith.constant 0.000000e+00 : f32
    %76 = vector.broadcast %cst_31 : f32 to vector<64x64xf32>
    %77 = arith.maximumf %75, %76 : vector<64x64xf32>
    %78 = vector.extract_strided_slice %9 {offsets = [1, 0, 0], sizes = [1, 64, 64], strides = [1, 1, 1]} : vector<2x64x64xf32> to vector<1x64x64xf32>
    %79 = vector.shape_cast %78 : vector<1x64x64xf32> to vector<64x64xf32>
    %80 = arith.mulf %77, %79 : vector<64x64xf32>
    %81 = arith.truncf %72 : vector<64x64xf32> to vector<64x64xbf16>
    %c16 = arith.constant 16 : index
    %c0_32 = arith.constant 0 : index
    %82 = vector.load %arg4[%c16, %c0_32] : memref<208x256xbf16, #tpu.memory_space<vmem>>, vector<64x256xbf16>
    %cst_33 = arith.constant dense<0.000000e+00> : vector<64x256xf32>
    %83 = tpu.matmul %81, %82, %cst_33 {dimension_numbers = #tpu.dot_dimension_numbers<[1], [0], [0], [1], [0, 0, 1, 1], [], []>} : vector<64x64xbf16>, vector<64x256xbf16>, vector<64x256xf32> -> vector<64x256xf32>
    %84 = arith.truncf %80 : vector<64x64xf32> to vector<64x64xbf16>
    %c80 = arith.constant 80 : index
    %c0_34 = arith.constant 0 : index
    %85 = vector.load %arg4[%c80, %c0_34] : memref<208x256xbf16, #tpu.memory_space<vmem>>, vector<64x256xbf16>
    %cst_35 = arith.constant dense<0.000000e+00> : vector<64x256xf32>
    %86 = tpu.matmul %84, %85, %cst_35 {dimension_numbers = #tpu.dot_dimension_numbers<[1], [0], [0], [1], [0, 0, 1, 1], [], []>} : vector<64x64xbf16>, vector<64x256xbf16>, vector<64x256xf32> -> vector<64x256xf32>
    %87 = arith.addf %83, %86 : vector<64x256xf32>
    %88 = vector.extract_strided_slice %87 {offsets = [0, 65], sizes = [64, 1], strides = [1, 1]} : vector<64x256xf32> to vector<64x1xf32>
    %89 = vector.extract_strided_slice %87 {offsets = [0, 64], sizes = [64, 1], strides = [1, 1]} : vector<64x256xf32> to vector<64x1xf32>
    %90 = vector.extract_strided_slice %87 {offsets = [0, 0], sizes = [64, 64], strides = [1, 1]} : vector<64x256xf32> to vector<64x64xf32>
    %91 = tpu.concatenate %88, %10 in 1 : vector<64x1xf32>, vector<64x1xf32> -> vector<64x2xf32>
    %92 = tpu.concatenate %10, %89 in 1 : vector<64x1xf32>, vector<64x1xf32> -> vector<64x2xf32>
    %cst_36 = arith.constant dense<0.000000e+00> : vector<64x64xf32>
    %93 = tpu.matmul %91, %92, %cst_36 {dimension_numbers = #tpu.dot_dimension_numbers<[1], [1], [0], [0], [0, 0, 1, 0], [], []>} : vector<64x2xf32>, vector<64x2xf32>, vector<64x64xf32> -> vector<64x64xf32>
    %cst_37 = arith.constant 0.000000e+00 : f32
    %94 = vector.broadcast %cst_37 : f32 to vector<64x64xf32>
    %95 = arith.cmpf ogt, %93, %94 : vector<64x64xf32>
    %cst_38 = arith.constant 2.000000e-01 : f32
    %96 = vector.broadcast %cst_38 : f32 to vector<64x64xf32>
    %97 = arith.mulf %96, %93 : vector<64x64xf32>
    %98 = arith.select %95, %93, %97 : vector<64x64xi1>, vector<64x64xf32>
    %cst_39 = arith.constant -1.000000e+09 : f32
    %99 = vector.broadcast %cst_39 : f32 to vector<64x64xf32>
    %100 = arith.select %4, %98, %99 : vector<64x64xi1>, vector<64x64xf32>
    %cst_40 = arith.constant dense<0xFF800000> : vector<64xf32>
    %101 = vector.multi_reduction <maximumf>, %100, %cst_40 [1] : vector<64x64xf32> to vector<64xf32>
    %102 = vector.shape_cast %101 : vector<64xf32> to vector<64x1xf32>
    %103 = vector.broadcast %102 : vector<64x1xf32> to vector<64x64xf32>
    %104 = arith.subf %100, %103 : vector<64x64xf32>
    %105 = math.exp %104 : vector<64x64xf32>
    %cst_41 = arith.constant dense<0.000000e+00> : vector<64xf32>
    %106 = vector.multi_reduction <add>, %105, %cst_41 [1] : vector<64x64xf32> to vector<64xf32>
    %107 = vector.shape_cast %106 : vector<64xf32> to vector<64x1xf32>
    %108 = arith.truncf %105 : vector<64x64xf32> to vector<64x64xbf16>
    %109 = arith.truncf %90 : vector<64x64xf32> to vector<64x64xbf16>
    %cst_42 = arith.constant dense<0.000000e+00> : vector<64x64xf32>
    %110 = tpu.matmul %108, %109, %cst_42 {dimension_numbers = #tpu.dot_dimension_numbers<[1], [0], [0], [1], [0, 0, 1, 1], [], []>} : vector<64x64xbf16>, vector<64x64xbf16>, vector<64x64xf32> -> vector<64x64xf32>
    %111 = tpu.reciprocal %107 {approx = true} : vector<64x1xf32> -> vector<64x1xf32>
    %112 = vector.broadcast %111 : vector<64x1xf32> to vector<64x64xf32>
    %113 = arith.mulf %110, %112 : vector<64x64xf32>
    %c2 = arith.constant 2 : index
    %c0_43 = arith.constant 0 : index
    %114 = vector.load %arg5[%c2, %c0_43] : memref<8x128xf32, #tpu.memory_space<vmem>>, vector<1x64xf32>
    %115 = vector.broadcast %114 : vector<1x64xf32> to vector<64x64xf32>
    %116 = arith.addf %113, %115 : vector<64x64xf32>
    %cst_44 = arith.constant 0.000000e+00 : f32
    %117 = vector.broadcast %cst_44 : f32 to vector<64x64xf32>
    %118 = arith.maximumf %116, %117 : vector<64x64xf32>
    %119 = arith.truncf %118 : vector<64x64xf32> to vector<64x64xbf16>
    %c144 = arith.constant 144 : index
    %c0_45 = arith.constant 0 : index
    %120 = vector.load %arg4[%c144, %c0_45] : memref<208x256xbf16, #tpu.memory_space<vmem>>, vector<64x256xbf16>
    %cst_46 = arith.constant dense<0.000000e+00> : vector<64x256xf32>
    %121 = tpu.matmul %119, %120, %cst_46 {dimension_numbers = #tpu.dot_dimension_numbers<[1], [0], [0], [1], [0, 0, 1, 1], [], []>} : vector<64x64xbf16>, vector<64x256xbf16>, vector<64x256xf32> -> vector<64x256xf32>
    %122 = vector.extract_strided_slice %121 {offsets = [0, 0], sizes = [64, 128], strides = [1, 1]} : vector<64x256xf32> to vector<64x128xf32>
    %c3 = arith.constant 3 : index
    %c0_47 = arith.constant 0 : index
    %123 = vector.load %arg5[%c3, %c0_47] : memref<8x128xf32, #tpu.memory_space<vmem>>, vector<1x128xf32>
    %124 = vector.broadcast %123 : vector<1x128xf32> to vector<64x128xf32>
    %125 = arith.addf %122, %124 : vector<64x128xf32>
    %c0_48 = arith.constant 0 : index
    %c0_49 = arith.constant 0 : index
    %c0_50 = arith.constant 0 : index
    %126 = vector.load %arg6[%c0_48, %c0_49, %c0_50] : memref<1x64x128xf32, #tpu.memory_space<vmem>>, vector<1x64x128xf32>
    %127 = vector.shape_cast %126 : vector<1x64x128xf32> to vector<64x128xf32>
    %128 = vector.shape_cast %125 : vector<64x128xf32> to vector<1x64x128xf32>
    tpu.vector_store %arg6[%c0_48, %c0_49, %c0_50], %128 {strides = array<i32>} : memref<1x64x128xf32, #tpu.memory_space<vmem>>, vector<1x64x128xf32>,
    return
  }
  func.func @transform_0(%arg0: i32) -> (i32, i32, i32) {
    %c0_i32 = arith.constant 0 : i32
    %c0_i32_0 = arith.constant 0 : i32
    %c0_i32_1 = arith.constant 0 : i32
    return %arg0, %c0_i32, %c0_i32_0 : i32, i32, i32
  }
  func.func @transform_1(%arg0: i32) -> (i32, i32, i32) {
    %c0_i32 = arith.constant 0 : i32
    %c0_i32_0 = arith.constant 0 : i32
    %c0_i32_1 = arith.constant 0 : i32
    return %arg0, %c0_i32, %c0_i32_0 : i32, i32, i32
  }
  func.func @transform_2(%arg0: i32) -> (i32, i32, i32, i32) {
    %c0_i32 = arith.constant 0 : i32
    %c0_i32_0 = arith.constant 0 : i32
    %c0_i32_1 = arith.constant 0 : i32
    %c0_i32_2 = arith.constant 0 : i32
    return %arg0, %c0_i32, %c0_i32_0, %c0_i32_1 : i32, i32, i32, i32
  }
  func.func @transform_3(%arg0: i32) -> (i32, i32) {
    %c0_i32 = arith.constant 0 : i32
    %c0_i32_0 = arith.constant 0 : i32
    %c0_i32_1 = arith.constant 0 : i32
    return %c0_i32, %c0_i32_0 : i32, i32
  }
  func.func @transform_4(%arg0: i32) -> (i32, i32) {
    %c0_i32 = arith.constant 0 : i32
    %c0_i32_0 = arith.constant 0 : i32
    %c0_i32_1 = arith.constant 0 : i32
    return %c0_i32, %c0_i32_0 : i32, i32
  }
  func.func @transform_5(%arg0: i32) -> (i32, i32, i32) {
    %c0_i32 = arith.constant 0 : i32
    %c0_i32_0 = arith.constant 0 : i32
    %c0_i32_1 = arith.constant 0 : i32
    return %arg0, %c0_i32, %c0_i32_0 : i32, i32, i32
  }
}

</mosaic_0001>

<llo_original>
// kernel: gat_forward.1
$region0: #{gat_forward.1}
  #allocation0 [shape = 'u32[]', space=smem, size = 0x4, offset = 0x4, fixed_abs, tag = 'smem constant byte address 0x4 - core index']
  #allocation1 [shape = 'u32[144,128]{1,0:T(1,128)}', space=vmem, size = 0x12000, scoped, tag = 'internal scratch']
  %s0 = inlined_call_operand.vmem [shape: s8[2,64,64], index: 0, kind: input, shape index: {}]
  %s1 = inlined_call_operand.vmem [shape: f32[2,64,16], index: 1, kind: input, shape index: {}]
  %s2 = inlined_call_operand.hbm [shape: f32[2,2,64,64], index: 2, kind: input, shape index: {}]
  %s3 = inlined_call_operand.hbm [shape: bf16[208,256], index: 3, kind: input, shape index: {}]
  %s4 = inlined_call_operand.vmem [shape: f32[8,128], index: 4, kind: input, shape index: {}]
  %s5 = inlined_call_operand.vmem [shape: f32[2,64,128], index: 5, kind: output, shape index: {}]
  %s6 = sld [smem:[#allocation0]]
  $region61: #{gat_forward.1} parent=0
    _
  %s8 = ssub.s32 1, %s6
  %s9 = scalar_select 0, %s8, %s6
  $region1: #{gat_forward.1} parent=0
    #allocation2 [shape = 'u8[131072]{0}', space=vmem, size = 0x20000, scoped, tag = 'input window, operand 2']
    #allocation3 [shape = 's32[2]{0}', space=sflag, size = 0x8, scoped, tag = 'scoped memory for gat_forward.1']
    #allocation4 [shape = 'u8[106496]{0}', space=vmem, size = 0x1a000, scoped, tag = 'input window, operand 3, single buffered']
    #allocation5 [shape = 's32[1]{0}', space=sflag, size = 0x4, scoped, tag = 'scoped memory for gat_forward.1']
    %10 = vsyncpa [#allocation3], 0
    %s11 = scalar_lea.sflag [#allocation3], 1
    %12 = vsyncpa %s11, 0
    %13 = vsyncpa [#allocation5], 0
    loop: start=0, step=1, limit=4
    $region2: #{gat_forward.1} parent=1 // loop_pre_header
      _
    $region3: #{gat_forward.1} parent=1 // loop_header
      %s15 = sphi 0, %s19
      %p16 = scmp.ge.s32.totalorder %s15, 4
      %s25 = sphi 0, %s27
      %s28 = sphi 0, %s25
      %s29 = sphi 0, %s28
      %s45 = sphi 0, %s29
      %s51 = sphi 0, %s53
      %s54 = sphi 0, %s51
      %s55 = sphi 0, %s54
      %s71 = sphi 0, %s55
      %s77 = sphi 0, %s79
      %s80 = sphi 0, %s77
      %s81 = sphi 0, %s80
      %s97 = sphi 0, %s81
      %s101 = sphi 0, %s101
      %s103 = sphi 0, %s101
      %s104 = sphi 0, %s103
      %s118 = sphi 0, %s104
      %s122 = sphi 0, %s122
      %s124 = sphi 0, %s122
      %s125 = sphi 0, %s124
      %s139 = sphi 0, %s125
      %s145 = sphi 0, %s147
      %s148 = sphi 0, %s145
      %s149 = sphi 0, %s148
      %s165 = sphi 0, %s149
    $region4: #{gat_forward.1} parent=1 // loop_header_branch
      %18 = sbr.rel (%p16) target = $region8
    $region5: #{gat_forward.1} parent=1 // loop_body
      %s20 = ssub.s32 %s15, 1
      %s21 = ssub.s32 %s15, 2
      %s22 = sadd.s32 %s15, 1
      %s23 = ssub.s32 %s15, %s22
      %p24 = scmp.eq.s32.totalorder %s23, 0
      %s26 = sadd.s32 %s25, 1
      %s27 = scalar_select %p24, %s25, %s26
      %p30 = pneg %p24
      %p31 = scmp.eq.s32.totalorder %s15, 1
      %p32 = por %p30, %p31
      %p33 = scmp.ne.s32.totalorder %s25, %s28
      %p34 = scmp.eq.s32.totalorder %s15, 0
      %p35 = por %p33, %p34
      %p36 = scmp.ne.s32.totalorder %s25, %s28
      %p37 = scmp.eq.s32.totalorder %s20, 1
      %p38 = por %p36, %p37
      %p39 = scmp.ne.s32.totalorder %s28, %s29
      %p40 = scmp.eq.s32.totalorder %s20, 0
      %p41 = por %p39, %p40
      %p42 = scmp.ne.s32.totalorder %s28, %s29
      %p43 = scmp.eq.s32.totalorder %s21, 1
      %p44 = por %p42, %p43
      %p46 = scmp.ne.s32.totalorder %s29, %s45
      %p47 = scmp.eq.s32.totalorder %s21, 0
      %p48 = por %p46, %p47
      %s49 = ssub.s32 %s15, %s22
      %p50 = scmp.eq.s32.totalorder %s49, 0
      %s52 = sadd.s32 %s51, 1
      %s53 = scalar_select %p50, %s51, %s52
      %p56 = pneg %p50
      %p57 = scmp.eq.s32.totalorder %s15, 1
      %p58 = por %p56, %p57
      %p59 = scmp.ne.s32.totalorder %s51, %s54
      %p60 = scmp.eq.s32.totalorder %s15, 0
      %p61 = por %p59, %p60
      %p62 = scmp.ne.s32.totalorder %s51, %s54
      %p63 = scmp.eq.s32.totalorder %s20, 1
      %p64 = por %p62, %p63
      %p65 = scmp.ne.s32.totalorder %s54, %s55
      %p66 = scmp.eq.s32.totalorder %s20, 0
      %p67 = por %p65, %p66
      %p68 = scmp.ne.s32.totalorder %s54, %s55
      %p69 = scmp.eq.s32.totalorder %s21, 1
      %p70 = por %p68, %p69
      %p72 = scmp.ne.s32.totalorder %s55, %s71
      %p73 = scmp.eq.s32.totalorder %s21, 0
      %p74 = por %p72, %p73
      %s75 = ssub.s32 %s15, %s22
      %p76 = scmp.eq.s32.totalorder %s75, 0
      %s78 = sadd.s32 %s77, 1
      %s79 = scalar_select %p76, %s77, %s78
      %p82 = pneg %p76
      %p83 = scmp.eq.s32.totalorder %s15, 1
      %p84 = por %p82, %p83
      %p85 = scmp.ne.s32.totalorder %s77, %s80
      %p86 = scmp.eq.s32.totalorder %s15, 0
      %p87 = por %p85, %p86
      %p88 = scmp.ne.s32.totalorder %s77, %s80
      %p89 = scmp.eq.s32.totalorder %s20, 1
      %p90 = por %p88, %p89
      %p91 = scmp.ne.s32.totalorder %s80, %s81
      %p92 = scmp.eq.s32.totalorder %s20, 0
      %p93 = por %p91, %p92
      %p94 = scmp.ne.s32.totalorder %s80, %s81
      %p95 = scmp.eq.s32.totalorder %s21, 1
      %p96 = por %p94, %p95
      %p98 = scmp.ne.s32.totalorder %s81, %s97
      %p99 = scmp.eq.s32.totalorder %s21, 0
      %p100 = por %p98, %p99
      %s102 = sadd.s32 %s101, 1
      %p105 = scmp.eq.s32.totalorder %s15, 1
      %p106 = scmp.ne.s32.totalorder %s101, %s103
      %p107 = scmp.eq.s32.totalorder %s15, 0
      %p108 = por %p106, %p107
      %p109 = scmp.ne.s32.totalorder %s101, %s103
      %p110 = scmp.eq.s32.totalorder %s20, 1
      %p111 = por %p109, %p110
      %p112 = scmp.ne.s32.totalorder %s103, %s104
      %p113 = scmp.eq.s32.totalorder %s20, 0
      %p114 = por %p112, %p113
      %p115 = scmp.ne.s32.totalorder %s103, %s104
      %p116 = scmp.eq.s32.totalorder %s21, 1
      %p117 = por %p115, %p116
      %p119 = scmp.ne.s32.totalorder %s104, %s118
      %p120 = scmp.eq.s32.totalorder %s21, 0
      %p121 = por %p119, %p120
      %s123 = sadd.s32 %s122, 1
      %p126 = scmp.eq.s32.totalorder %s15, 1
      %p127 = scmp.ne.s32.totalorder %s122, %s124
      %p128 = scmp.eq.s32.totalorder %s15, 0
      %p129 = por %p127, %p128
      %p130 = scmp.ne.s32.totalorder %s122, %s124
      %p131 = scmp.eq.s32.totalorder %s20, 1
      %p132 = por %p130, %p131
      %p133 = scmp.ne.s32.totalorder %s124, %s125
      %p134 = scmp.eq.s32.totalorder %s20, 0
      %p135 = por %p133, %p134
      %p136 = scmp.ne.s32.totalorder %s124, %s125
      %p137 = scmp.eq.s32.totalorder %s21, 1
      %p138 = por %p136, %p137
      %p140 = scmp.ne.s32.totalorder %s125, %s139
      %p141 = scmp.eq.s32.totalorder %s21, 0
      %p142 = por %p140, %p141
      %s143 = ssub.s32 %s15, %s22
      %p144 = scmp.eq.s32.totalorder %s143, 0
      %s146 = sadd.s32 %s145, 1
      %s147 = scalar_select %p144, %s145, %s146
      %p150 = pneg %p144
      %p151 = scmp.eq.s32.totalorder %s15, 1
      %p152 = por %p150, %p151
      %p153 = scmp.ne.s32.totalorder %s145, %s148
      %p154 = scmp.eq.s32.totalorder %s15, 0
      %p155 = por %p153, %p154
      %p156 = scmp.ne.s32.totalorder %s145, %s148
      %p157 = scmp.eq.s32.totalorder %s20, 1
      %p158 = por %p156, %p157
      %p159 = scmp.ne.s32.totalorder %s148, %s149
      %p160 = scmp.eq.s32.totalorder %s20, 0
      %p161 = por %p159, %p160
      %p162 = scmp.ne.s32.totalorder %s148, %s149
      %p163 = scmp.eq.s32.totalorder %s21, 1
      %p164 = por %p162, %p163
      %p166 = scmp.ne.s32.totalorder %s149, %s165
      %p167 = scmp.eq.s32.totalorder %s21, 0
      %p168 = por %p166, %p167
      %p169 = scmp.le.s32.totalorder 1, %s15
      %p170 = scmp.lt.s32.totalorder %s15, 3
      %p171 = pnand %p169, %p170
      %p172 = pneg %p171
      // Predicated region
      $region9: #{gat_forward.1} parent=5 // pred_check
        _
      $region10: #{gat_forward.1} parent=5 // pred_check_branch
        %174 = sbr.rel (%p171) target = $region12
      $region11: #{gat_forward.1} parent=5 // pred_region
        %s175 = ssub.s32 %s15, 1
        // Predicated region
        $region13: #{gat_forward.1} parent=11 // pred_check
          %p176 = pneg %p114
        $region14: #{gat_forward.1} parent=11 // pred_check_branch
          %178 = sbr.rel (%p176) target = $region16
        $region15: #{gat_forward.1} parent=11 // pred_region
          %s180 = ssub.s32 3328, 3328
          %181 = vsyncadd [#allocation5], %s180
          %s182 = sshll.u32 [#allocation4], 4
          %s183 = int_to_ptr.vmem [resolvable:$true] %s182
          %188 = dma.hbm_to_vmem [thread:$0]  %s3, 3328, %s183, [#allocation5], 128, 128, 8
        $region16: #{gat_forward.1} parent=11 // pred_fallthru
          _
        // Predicated region
        $region17: #{gat_forward.1} parent=11 // pred_check
          %p189 = pneg %p135
        $region18: #{gat_forward.1} parent=11 // pred_check_branch
          %191 = sbr.rel (%p189) target = $region20
        $region19: #{gat_forward.1} parent=11 // pred_region
          _
        $region20: #{gat_forward.1} parent=11 // pred_fallthru
          _
      $region12: #{gat_forward.1} parent=5 // pred_fallthru
        _
      %p192 = scmp.lt.s32.totalorder %s15, 2
      // Predicated region
      $region21: #{gat_forward.1} parent=5 // pred_check
        %p193 = pneg %p192
      $region22: #{gat_forward.1} parent=5 // pred_check_branch
        %195 = sbr.rel (%p193) target = $region24
      $region23: #{gat_forward.1} parent=5 // pred_region
        // Predicated region
        $region25: #{gat_forward.1} parent=23 // pred_check
          %p196 = pneg %p35
        $region26: #{gat_forward.1} parent=23 // pred_check_branch
          %198 = sbr.rel (%p196) target = $region28
        $region27: #{gat_forward.1} parent=23 // pred_region
          %p199 = scmp.lt.s32.totalorder %s15, 1
          %s200 = scalar_select %p199, %s15, 1
          %s201 = smul.addr %s200, 2
          %s202 = smul.addr %s201, 8
          %s203 = scalar_lea.vmem %s0, %s202
        $region28: #{gat_forward.1} parent=23 // pred_fallthru
          _
        // Predicated region
        $region29: #{gat_forward.1} parent=23 // pred_check
          %p204 = pneg %p61
        $region30: #{gat_forward.1} parent=23 // pred_check_branch
          %206 = sbr.rel (%p204) target = $region32
        $region31: #{gat_forward.1} parent=23 // pred_region
          %p207 = scmp.lt.s32.totalorder %s15, 1
          %s208 = scalar_select %p207, %s15, 1
          %s209 = smul.addr %s208, 8
          %s210 = smul.addr %s209, 8
          %s211 = scalar_lea.vmem %s1, %s210
        $region32: #{gat_forward.1} parent=23 // pred_fallthru
          _
        // Predicated region
        $region33: #{gat_forward.1} parent=23 // pred_check
          %p212 = pneg %p87
        $region34: #{gat_forward.1} parent=23 // pred_check_branch
          %214 = sbr.rel (%p212) target = $region36
        $region35: #{gat_forward.1} parent=23 // pred_region
          %s215 = sand.u32 %s77, 1
          %s216 = scalar_lea.sflag [#allocation3], %s215
          %s217 = sand.u32 %s77, 1
          %s218 = smul.addr %s217, 128
          %s219 = scalar_lea.vmem [#allocation2], %s218
          %s221 = ssub.s32 2048, 2048
          %222 = vsyncadd %s216, %s221
          %s223 = smul.addr %s15, 16
          %s224 = smul.addr %s223, 128
          %s225 = scalar_lea.hbm %s2, %s224
          %s226 = sshll.u32 %s219, 4
          %s227 = int_to_ptr.vmem [resolvable:$true] %s226
          %232 = dma.hbm_to_vmem [thread:$0]  %s225, 2048, %s227, %s216, 128, 128, 8
        $region36: #{gat_forward.1} parent=23 // pred_fallthru
          _
      $region24: #{gat_forward.1} parent=5 // pred_fallthru
        _
      %p233 = scmp.le.s32.totalorder 1, %s15
      %p234 = scmp.lt.s32.totalorder %s15, 3
      %p235 = pnand %p233, %p234
      %p236 = pneg %p235
      // Predicated region
      $region37: #{gat_forward.1} parent=5 // pred_check
        _
      $region38: #{gat_forward.1} parent=5 // pred_check_branch
        %238 = sbr.rel (%p235) target = $region40
      $region39: #{gat_forward.1} parent=5 // pred_region
        %s239 = ssub.s32 %s15, 1
        %s240 = sand.u32 %s80, 1
        %s241 = scalar_lea.sflag [#allocation3], %s240
        %s242 = sand.u32 %s80, 1
        %s243 = smul.addr %s242, 128
        %s244 = scalar_lea.vmem [#allocation2], %s243
        // Predicated region
        $region41: #{gat_forward.1} parent=39 // pred_check
          %p245 = pneg %p93
        $region42: #{gat_forward.1} parent=39 // pred_check_branch
          %247 = sbr.rel (%p245) target = $region44
        $region43: #{gat_forward.1} parent=39 // pred_region
          %248 = dma.done %s241, 2048
        $region44: #{gat_forward.1} parent=39 // pred_fallthru
          _
        // Predicated region
        $region45: #{gat_forward.1} parent=39 // pred_check
          %p249 = pneg %p114
        $region46: #{gat_forward.1} parent=39 // pred_check_branch
          %251 = sbr.rel (%p249) target = $region48
        $region47: #{gat_forward.1} parent=39 // pred_region
          %252 = dma.done [#allocation5], 3328
        $region48: #{gat_forward.1} parent=39 // pred_fallthru
          _
        %p253 = scmp.lt.s32.totalorder %s20, 1
        %s254 = scalar_select %p253, %s20, 1
        %s255 = smul.addr %s254, 2
        %s256 = smul.addr %s255, 8
        %s257 = scalar_lea.vmem %s0, %s256
        %p258 = pneg %p41
        %p259 = pneg %p38
        %p260 = scmp.lt.s32.totalorder %s20, 1
        %s261 = scalar_select %p260, %s20, 1
        %s262 = smul.addr %s261, 8
        %s263 = smul.addr %s262, 8
        %s264 = scalar_lea.vmem %s1, %s263
        %p265 = pneg %p67
        %p266 = pneg %p64
        %s267 = sand.u32 %s80, 1
        %s268 = scalar_lea.sflag [#allocation3], %s267
        %s269 = sand.u32 %s80, 1
        %s270 = smul.addr %s269, 128
        %s271 = scalar_lea.vmem [#allocation2], %s270
        %p272 = pneg %p93
        %p273 = pneg %p90
        %p274 = pneg %p114
        %p275 = pneg %p111
        %p276 = pneg %p135
        %p277 = pneg %p132
        %p278 = pneg %p161
        %p279 = pneg %p158
        %p280 = scmp.lt.s32.totalorder %s20, 1
        %s281 = scalar_select %p280, %s20, 1
        %s282 = smul.addr %s281, 8
        %s283 = smul.addr %s282, 8
        %s284 = scalar_lea.vmem %s5, %s283
        %p285 = scmp.lt.s32.totalorder %s20, 1
        %s286 = scalar_select %p285, %s20, 1
        %s287 = smul.addr %s286, 2
        %s288 = smul.addr %s287, 8
        %s289 = scalar_lea.vmem %s0, %s288
        %p290 = scmp.lt.s32.totalorder %s20, 1
        %s291 = scalar_select %p290, %s20, 1
        %s292 = smul.addr %s291, 8
        %s293 = smul.addr %s292, 8
        %s294 = scalar_lea.vmem %s1, %s293
        %p295 = scmp.lt.s32.totalorder %s20, 1
        %s296 = scalar_select %p295, %s20, 1
        %s297 = smul.addr %s296, 8
        %s298 = smul.addr %s297, 8
        %s299 = scalar_lea.vmem %s5, %s298
        %v301 = vld [vmem:[%s289] sm:$0xff]
        %v302 = vld [vmem:[%s289 + $0x8] sm:$0xff]
        %v303 = vunpack.c.0.s8 %v301
        %v304 = vunpack.c.1.s8 %v301
        %v305 = vunpack.c.2.s8 %v301
        %v306 = vunpack.c.3.s8 %v301
        %v307 = vunpack.c.0.s8 %v302
        %v308 = vunpack.c.1.s8 %v302
        %v309 = vunpack.c.2.s8 %v302
        %v310 = vunpack.c.3.s8 %v302
        %v311 = vcvt.s32.f32 %v303
        %v312 = vcvt.s32.f32 %v304
        %v313 = vcvt.s32.f32 %v305
        %v314 = vcvt.s32.f32 %v306
        %v315 = vcvt.s32.f32 %v307
        %v316 = vcvt.s32.f32 %v308
        %v317 = vcvt.s32.f32 %v309
        %v318 = vcvt.s32.f32 %v310
        %vm319 = vcmp.gt.f32.partialorder %v311, 0.0
        %vm320 = vcmp.gt.f32.partialorder %v312, 0.0
        %vm321 = vcmp.gt.f32.partialorder %v313, 0.0
        %vm322 = vcmp.gt.f32.partialorder %v314, 0.0
        %vm323 = vcmp.gt.f32.partialorder %v315, 0.0
        %vm324 = vcmp.gt.f32.partialorder %v316, 0.0
        %vm325 = vcmp.gt.f32.partialorder %v317, 0.0
        %vm326 = vcmp.gt.f32.partialorder %v318, 0.0
        %v327 = vld [vmem:[%s294] sm:$0xff]
        %v328 = vld [vmem:[%s294 + $0x8] sm:$0xff]
        %v329 = vld [vmem:[%s294 + $0x10] sm:$0xff]
        %v330 = vld [vmem:[%s294 + $0x18] sm:$0xff]
        %v331 = vld [vmem:[%s294 + $0x20] sm:$0xff]
        %v332 = vld [vmem:[%s294 + $0x28] sm:$0xff]
        %v333 = vld [vmem:[%s294 + $0x30] sm:$0xff]
        %v334 = vld [vmem:[%s294 + $0x38] sm:$0xff]
        %v335 = vpack.c.bf16 %v328, %v327
        %v336 = vpack.c.bf16 %v330, %v329
        %v337 = vpack.c.bf16 %v332, %v331
        %v338 = vpack.c.bf16 %v334, %v333
        %v339 = vld [vmem:[%s244] sm:$0xff]
        %v340 = vld [vmem:[%s244 + $0x8] sm:$0xff]
        %v341 = vld [vmem:[%s244 + $0x10] sm:$0xff]
        %v342 = vld [vmem:[%s244 + $0x18] sm:$0xff]
        %v343 = vld [vmem:[%s244 + $0x20] sm:$0xff]
        %v344 = vld [vmem:[%s244 + $0x28] sm:$0xff]
        %v345 = vld [vmem:[%s244 + $0x30] sm:$0xff]
        %v346 = vld [vmem:[%s244 + $0x38] sm:$0xff]
        %v347 = vld [vmem:[%s244 + $0x40] sm:$0xff]
        %v348 = vld [vmem:[%s244 + $0x48] sm:$0xff]
        %v349 = vld [vmem:[%s244 + $0x50] sm:$0xff]
        %v350 = vld [vmem:[%s244 + $0x58] sm:$0xff]
        %v351 = vld [vmem:[%s244 + $0x60] sm:$0xff]
        %v352 = vld [vmem:[%s244 + $0x68] sm:$0xff]
        %v353 = vld [vmem:[%s244 + $0x70] sm:$0xff]
        %v354 = vld [vmem:[%s244 + $0x78] sm:$0xff]
        %v355 = vld [vmem:[#allocation4] sm:$0xff]
        %v356 = vld [vmem:[#allocation4 + $0x8] sm:$0xff]
        %v359 = vunpack.c.l.b16 %v355
        %v360 = vunpack.c.h.b16 %v355
        %v361 = vunpack.c.l.b16 %v356
        %v362 = vunpack.c.h.b16 %v356
        %v363 = vpack.c.b16 %v361, %v359
        %v364 = vpack.c.b16 %v362, %v360
        %vm367 = vcmask 130048
        %v369 = vsel %vm367, %v335, 0
        %v372 = vsel %vm367, %v336, 0
        %v375 = vsel %vm367, %v337, 0
        %v378 = vsel %vm367, %v338, 0
        %380 = vmatprep.subr.bf16.mxu0 %v364
        %381 = vmatpush1.bf16.msra.mxu0 %v363
        %382 = vmatprep.subr.bf16.mxu0 0
        %383 = vmatpush1.bf16.msra.mxu0 0
        %384 = vmatprep.subr.bf16.mxu0 0
        %385 = vmatpush1.bf16.msra.mxu0 0
        %386 = vmatprep.subr.bf16.mxu0 0
        %387 = vmatpush1.bf16.msra.mxu0 0
        %388 = vmatprep.subr.bf16.mxu0 0
        %389 = vmatpush1.bf16.msra.mxu0 0
        %390 = vmatprep.subr.bf16.mxu0 0
        %391 = vmatpush1.bf16.msra.mxu0 0
        %392 = vmatprep.subr.bf16.mxu0 0
        %393 = vmatpush1.bf16.msra.mxu0 0
        %394 = vmatprep.subr.bf16.mxu0 0
        %395 = vmatpush1.bf16.msra.mxu0 0
        %396 = vmatprep.subr.bf16.mxu0 0
        %397 = vmatpush1.bf16.msra.mxu0 0
        %398 = vmatprep.subr.bf16.mxu0 0
        %399 = vmatpush1.bf16.msra.mxu0 0
        %400 = vmatprep.subr.bf16.mxu0 0
        %401 = vmatpush1.bf16.msra.mxu0 0
        %402 = vmatprep.subr.bf16.mxu0 0
        %403 = vmatpush1.bf16.msra.mxu0 0
        %404 = vmatprep.subr.bf16.mxu0 0
        %405 = vmatpush1.bf16.msra.mxu0 0
        %406 = vmatprep.subr.bf16.mxu0 0
        %407 = vmatpush1.bf16.msra.mxu0 0
        %408 = vmatprep.subr.bf16.mxu0 0
        %409 = vmatpush1.bf16.msra.mxu0 0
        %410 = vmatprep.subr.bf16.mxu0 0
        %411 = vmatpush1.bf16.msra.mxu0 0
        %412 = vmatprep.mubr.bf16.mxu0 0
        %413 = vmatmul.mubr.bf16.gmra.mrb[0].mxu0 %v369
        %v414 = vpop.f32.mrb[0].mxu0
        %v415 = vadd.f32 0.0, %v414
        %v416 = vpop.f32.mrb[0].mxu0
        %v417 = vadd.f32 0.0, %v416
        %v418 = vpop.f32.mrb[0].mxu0
        %v419 = vadd.f32 0.0, %v418
        %v420 = vpop.f32.mrb[0].mxu0
        %v421 = vadd.f32 0.0, %v420
        %422 = vmatprep.mubr.bf16.mxu0 0
        %423 = vmatmul.mubr.bf16.gmra.mrb[0].mxu0 %v372
        %v424 = vpop.f32.mrb[0].mxu0
        %v425 = vadd.f32 0.0, %v424
        %v426 = vpop.f32.mrb[0].mxu0
        %v427 = vadd.f32 0.0, %v426
        %v428 = vpop.f32.mrb[0].mxu0
        %v429 = vadd.f32 0.0, %v428
        %v430 = vpop.f32.mrb[0].mxu0
        %v431 = vadd.f32 0.0, %v430
        %432 = vmatprep.mubr.bf16.mxu0 0
        %433 = vmatmul.mubr.bf16.gmra.mrb[0].mxu0 %v375
        %v434 = vpop.f32.mrb[0].mxu0
        %v435 = vadd.f32 0.0, %v434
        %v436 = vpop.f32.mrb[0].mxu0
        %v437 = vadd.f32 0.0, %v436
        %v438 = vpop.f32.mrb[0].mxu0
        %v439 = vadd.f32 0.0, %v438
        %v440 = vpop.f32.mrb[0].mxu0
        %v441 = vadd.f32 0.0, %v440
        %442 = vmatprep.mubr.bf16.mxu0 0
        %443 = vmatmul.mubr.bf16.gmra.mrb[0].mxu0 %v378
        %v444 = vpop.f32.mrb[0].mxu0
        %v445 = vadd.f32 0.0, %v444
        %v446 = vpop.f32.mrb[0].mxu0
        %v447 = vadd.f32 0.0, %v446
        %v448 = vpop.f32.mrb[0].mxu0
        %v449 = vadd.f32 0.0, %v448
        %v450 = vpop.f32.mrb[0].mxu0
        %v451 = vadd.f32 0.0, %v450
        %452 = vdwg.mxu0
        %461 = vrot.lane.b32.xlu0 %v417, 127
        %v462 = vpop.permute.xlu0 %461
        %463 = vrot.lane.b32.xlu0 %v421, 127
        %v464 = vpop.permute.xlu0 %463
        %465 = vrot.lane.b32.xlu0 %v427, 127
        %v466 = vpop.permute.xlu0 %465
        %467 = vrot.lane.b32.xlu0 %v431, 127
        %v468 = vpop.permute.xlu0 %467
        %469 = vrot.lane.b32.xlu0 %v437, 127
        %v470 = vpop.permute.xlu0 %469
        %471 = vrot.lane.b32.xlu0 %v441, 127
        %v472 = vpop.permute.xlu0 %471
        %473 = vrot.lane.b32.xlu0 %v447, 127
        %v474 = vpop.permute.xlu0 %473
        %475 = vrot.lane.b32.xlu0 %v451, 127
        %v476 = vpop.permute.xlu0 %475
        %vm485 = vcmask 7168
        %v486 = vsel %vm485, %v462, 1.0
        %v487 = vsel %vm485, %v464, 1.0
        %v488 = vsel %vm485, %v466, 1.0
        %v489 = vsel %vm485, %v468, 1.0
        %v490 = vsel %vm485, %v470, 1.0
        %v491 = vsel %vm485, %v472, 1.0
        %v492 = vsel %vm485, %v474, 1.0
        %v493 = vsel %vm485, %v476, 1.0
        %494 = vrot.lane.b32.xlu0 %v417, 1
        %v495 = vpop.permute.xlu0 %494
        %496 = vrot.lane.b32.xlu0 %v421, 1
        %v497 = vpop.permute.xlu0 %496
        %498 = vrot.lane.b32.xlu0 %v427, 1
        %v499 = vpop.permute.xlu0 %498
        %500 = vrot.lane.b32.xlu0 %v431, 1
        %v501 = vpop.permute.xlu0 %500
        %502 = vrot.lane.b32.xlu0 %v437, 1
        %v503 = vpop.permute.xlu0 %502
        %504 = vrot.lane.b32.xlu0 %v441, 1
        %v505 = vpop.permute.xlu0 %504
        %506 = vrot.lane.b32.xlu0 %v447, 1
        %v507 = vpop.permute.xlu0 %506
        %508 = vrot.lane.b32.xlu0 %v451, 1
        %v509 = vpop.permute.xlu0 %508
        %v518 = vsel %vm485, 1.0, %v495
        %v519 = vsel %vm485, 1.0, %v497
        %v520 = vsel %vm485, 1.0, %v499
        %v521 = vsel %vm485, 1.0, %v501
        %v522 = vsel %vm485, 1.0, %v503
        %v523 = vsel %vm485, 1.0, %v505
        %v524 = vsel %vm485, 1.0, %v507
        %v525 = vsel %vm485, 1.0, %v509
        %vm526 = vcmask 15360
        %v528 = vsel %vm526, %v486, 0
        %v531 = vsel %vm526, %v487, 0
        %v534 = vsel %vm526, %v488, 0
        %v537 = vsel %vm526, %v489, 0
        %v540 = vsel %vm526, %v490, 0
        %v543 = vsel %vm526, %v491, 0
        %v546 = vsel %vm526, %v492, 0
        %v549 = vsel %vm526, %v493, 0
        %v552 = vsel %vm526, %v518, 0
        %v555 = vsel %vm526, %v519, 0
        %v558 = vsel %vm526, %v520, 0
        %v561 = vsel %vm526, %v521, 0
        %v564 = vsel %vm526, %v522, 0
        %v567 = vsel %vm526, %v523, 0
        %v570 = vsel %vm526, %v524, 0
        %v573 = vsel %vm526, %v525, 0
        %575 = vmatprep.subr.mxu0 0.0
        %576 = vmatpush1.xpose.msra.mxu0 %v552
        %577 = vmatprep.subr.mxu0 0.0
        %578 = vmatpush1.xpose.msra.mxu0 %v555
        %579 = vmatprep.subr.mxu0 0.0
        %580 = vmatpush1.xpose.msra.mxu0 %v558
        %581 = vmatprep.subr.mxu0 0.0
        %582 = vmatpush1.xpose.msra.mxu0 %v561
        %583 = vmatprep.subr.mxu0 0.0
        %584 = vmatpush1.xpose.msra.mxu0 %v564
        %585 = vmatprep.subr.mxu0 0.0
        %586 = vmatpush1.xpose.msra.mxu0 %v567
        %587 = vmatprep.subr.mxu0 0.0
        %588 = vmatpush1.xpose.msra.mxu0 %v570
        %589 = vmatprep.subr.mxu0 0.0
        %590 = vmatpush1.xpose.msra.mxu0 %v573
        %591 = vmatprep.subr.mxu0 0.0
        %592 = vmatpush1.xpose.msra.mxu0 0.0
        %593 = vmatprep.subr.mxu0 0.0
        %594 = vmatpush1.xpose.msra.mxu0 0.0
        %595 = vmatprep.subr.mxu0 0.0
        %596 = vmatpush1.xpose.msra.mxu0 0.0
        %597 = vmatprep.subr.mxu0 0.0
        %598 = vmatpush1.xpose.msra.mxu0 0.0
        %599 = vmatprep.subr.mxu0 0.0
        %600 = vmatpush1.xpose.msra.mxu0 0.0
        %601 = vmatprep.subr.mxu0 0.0
        %602 = vmatpush1.xpose.msra.mxu0 0.0
        %603 = vmatprep.subr.mxu0 0.0
        %604 = vmatpush1.xpose.msra.mxu0 0.0
        %605 = vmatprep.subr.mxu0 0.0
        %606 = vmatpush1.xpose.msra.mxu0 0.0
        %607 = vmatprep.subr.mxu0 0.0
        %608 = vmatpush1.xpose.msra.mxu0 0.0
        %609 = vmatprep.subr.mxu0 0.0
        %610 = vmatpush1.xpose.msra.mxu0 0.0
        %611 = vmatprep.subr.mxu0 0.0
        %612 = vmatpush1.xpose.msra.mxu0 0.0
        %613 = vmatprep.subr.mxu0 0.0
        %614 = vmatpush1.xpose.msra.mxu0 0.0
        %615 = vmatprep.subr.mxu0 0.0
        %616 = vmatpush1.xpose.msra.mxu0 0.0
        %617 = vmatprep.subr.mxu0 0.0
        %618 = vmatpush1.xpose.msra.mxu0 0.0
        %619 = vmatprep.subr.mxu0 0.0
        %620 = vmatpush1.xpose.msra.mxu0 0.0
        %621 = vmatprep.subr.mxu0 0.0
        %622 = vmatpush1.xpose.msra.mxu0 0.0
        %623 = vmatprep.subr.mxu0 0.0
        %624 = vmatpush1.xpose.msra.mxu0 0.0
        %625 = vmatprep.subr.mxu0 0.0
        %626 = vmatpush1.xpose.msra.mxu0 0.0
        %627 = vmatprep.subr.mxu0 0.0
        %628 = vmatpush1.xpose.msra.mxu0 0.0
        %629 = vmatprep.subr.mxu0 0.0
        %630 = vmatpush1.xpose.msra.mxu0 0.0
        %631 = vmatprep.subr.mxu0 0.0
        %632 = vmatpush1.xpose.msra.mxu0 0.0
        %633 = vmatprep.subr.mxu0 0.0
        %634 = vmatpush1.xpose.msra.mxu0 0.0
        %635 = vmatprep.subr.mxu0 0.0
        %636 = vmatpush1.xpose.msra.mxu0 0.0
        %637 = vmatprep.subr.mxu0 0.0
        %638 = vmatpush1.xpose.msra.mxu0 0.0
        %639 = vmatprep.mubr.f32.mxu0 0.0
        %640 = vmatmul.mubr.f32.gmra.mrb[0].mxu0 %v528
        %v641 = vpop.f32.mrb[0].mxu0
        %v642 = vadd.f32 0.0, %v641
        %v643 = vpop.f32.mrb[0].mxu0
        %644 = vmatprep.mubr.f32.mxu0 0.0
        %645 = vmatmul.mubr.f32.gmra.mrb[0].mxu0 %v531
        %v646 = vpop.f32.mrb[0].mxu0
        %v647 = vadd.f32 0.0, %v646
        %v648 = vpop.f32.mrb[0].mxu0
        %649 = vmatprep.mubr.f32.mxu0 0.0
        %650 = vmatmul.mubr.f32.gmra.mrb[0].mxu0 %v534
        %v651 = vpop.f32.mrb[0].mxu0
        %v652 = vadd.f32 0.0, %v651
        %v653 = vpop.f32.mrb[0].mxu0
        %654 = vmatprep.mubr.f32.mxu0 0.0
        %655 = vmatmul.mubr.f32.gmra.mrb[0].mxu0 %v537
        %v656 = vpop.f32.mrb[0].mxu0
        %v657 = vadd.f32 0.0, %v656
        %v658 = vpop.f32.mrb[0].mxu0
        %659 = vmatprep.mubr.f32.mxu0 0.0
        %660 = vmatmul.mubr.f32.gmra.mrb[0].mxu0 %v540
        %v661 = vpop.f32.mrb[0].mxu0
        %v662 = vadd.f32 0.0, %v661
        %v663 = vpop.f32.mrb[0].mxu0
        %664 = vmatprep.mubr.f32.mxu0 0.0
        %665 = vmatmul.mubr.f32.gmra.mrb[0].mxu0 %v543
        %v666 = vpop.f32.mrb[0].mxu0
        %v667 = vadd.f32 0.0, %v666
        %v668 = vpop.f32.mrb[0].mxu0
        %669 = vmatprep.mubr.f32.mxu0 0.0
        %670 = vmatmul.mubr.f32.gmra.mrb[0].mxu0 %v546
        %v671 = vpop.f32.mrb[0].mxu0
        %v672 = vadd.f32 0.0, %v671
        %v673 = vpop.f32.mrb[0].mxu0
        %674 = vmatprep.mubr.f32.mxu0 0.0
        %675 = vmatmul.mubr.f32.gmra.mrb[0].mxu0 %v549
        %v676 = vpop.f32.mrb[0].mxu0
        %v677 = vadd.f32 0.0, %v676
        %v678 = vpop.f32.mrb[0].mxu0
        %679 = vdwg.mxu0
        %vm680 = vcmp.gt.f32.partialorder %v642, 0.0
        %vm681 = vcmp.gt.f32.partialorder %v647, 0.0
        %vm682 = vcmp.gt.f32.partialorder %v652, 0.0
        %vm683 = vcmp.gt.f32.partialorder %v657, 0.0
        %vm684 = vcmp.gt.f32.partialorder %v662, 0.0
        %vm685 = vcmp.gt.f32.partialorder %v667, 0.0
        %vm686 = vcmp.gt.f32.partialorder %v672, 0.0
        %vm687 = vcmp.gt.f32.partialorder %v677, 0.0
        %v688 = vmul.f32 %v642, 0.2
        %v689 = vmul.f32 %v647, 0.2
        %v690 = vmul.f32 %v652, 0.2
        %v691 = vmul.f32 %v657, 0.2
        %v692 = vmul.f32 %v662, 0.2
        %v693 = vmul.f32 %v667, 0.2
        %v694 = vmul.f32 %v672, 0.2
        %v695 = vmul.f32 %v677, 0.2
        %v696 = vsel %vm680, %v642, %v688
        %v697 = vsel %vm681, %v647, %v689
        %v698 = vsel %vm682, %v652, %v690
        %v699 = vsel %vm683, %v657, %v691
        %v700 = vsel %vm684, %v662, %v692
        %v701 = vsel %vm685, %v667, %v693
        %v702 = vsel %vm686, %v672, %v694
        %v703 = vsel %vm687, %v677, %v695
        %v704 = vsel %vm319, %v696, -1e+09
        %v705 = vsel %vm320, %v697, -1e+09
        %v706 = vsel %vm321, %v698, -1e+09
        %v707 = vsel %vm322, %v699, -1e+09
        %v708 = vsel %vm323, %v700, -1e+09
        %v709 = vsel %vm324, %v701, -1e+09
        %v710 = vsel %vm325, %v702, -1e+09
        %v711 = vsel %vm326, %v703, -1e+09
        %vm712 = vcmask 523264
        %v713 = vsel %vm712, %v704, -inf
        %714 = vmax.xlane.f32.xlu0 %v713
        %v715 = vpop.xlane.xlu0 %714
        %v716 = vsel %vm712, %v705, -inf
        %717 = vmax.xlane.f32.xlu0 %v716
        %v718 = vpop.xlane.xlu0 %717
        %v719 = vsel %vm712, %v706, -inf
        %720 = vmax.xlane.f32.xlu0 %v719
        %v721 = vpop.xlane.xlu0 %720
        %v722 = vsel %vm712, %v707, -inf
        %723 = vmax.xlane.f32.xlu0 %v722
        %v724 = vpop.xlane.xlu0 %723
        %v725 = vsel %vm712, %v708, -inf
        %726 = vmax.xlane.f32.xlu0 %v725
        %v727 = vpop.xlane.xlu0 %726
        %v728 = vsel %vm712, %v709, -inf
        %729 = vmax.xlane.f32.xlu0 %v728
        %v730 = vpop.xlane.xlu0 %729
        %v731 = vsel %vm712, %v710, -inf
        %732 = vmax.xlane.f32.xlu0 %v731
        %v733 = vpop.xlane.xlu0 %732
        %v734 = vsel %vm712, %v711, -inf
        %735 = vmax.xlane.f32.xlu0 %v734
        %v736 = vpop.xlane.xlu0 %735
        %v737 = vsub.f32 %v704, %v715
        %v738 = vsub.f32 %v705, %v718
        %v739 = vsub.f32 %v706, %v721
        %v740 = vsub.f32 %v707, %v724
        %v741 = vsub.f32 %v708, %v727
        %v742 = vsub.f32 %v709, %v730
        %v743 = vsub.f32 %v710, %v733
        %v744 = vsub.f32 %v711, %v736
        %v745 = vmul.f32 %v737, 1.442695
        %v746 = vpow.pop %v745
        %v747 = vmul.f32 %v738, 1.442695
        %v748 = vpow.pop %v747
        %v749 = vmul.f32 %v739, 1.442695
        %v750 = vpow.pop %v749
        %v751 = vmul.f32 %v740, 1.442695
        %v752 = vpow.pop %v751
        %v753 = vmul.f32 %v741, 1.442695
        %v754 = vpow.pop %v753
        %v755 = vmul.f32 %v742, 1.442695
        %v756 = vpow.pop %v755
        %v757 = vmul.f32 %v743, 1.442695
        %v758 = vpow.pop %v757
        %v759 = vmul.f32 %v744, 1.442695
        %v760 = vpow.pop %v759
        %v761 = vsel %vm712, %v746, 0.0
        %762 = vadd.xlane.f32.xlu0 %v761
        %v763 = vpop.xlane.xlu0 %762
        %v764 = vsel %vm712, %v748, 0.0
        %765 = vadd.xlane.f32.xlu0 %v764
        %v766 = vpop.xlane.xlu0 %765
        %v767 = vsel %vm712, %v750, 0.0
        %768 = vadd.xlane.f32.xlu0 %v767
        %v769 = vpop.xlane.xlu0 %768
        %v770 = vsel %vm712, %v752, 0.0
        %771 = vadd.xlane.f32.xlu0 %v770
        %v772 = vpop.xlane.xlu0 %771
        %v773 = vsel %vm712, %v754, 0.0
        %774 = vadd.xlane.f32.xlu0 %v773
        %v775 = vpop.xlane.xlu0 %774
        %v776 = vsel %vm712, %v756, 0.0
        %777 = vadd.xlane.f32.xlu0 %v776
        %v778 = vpop.xlane.xlu0 %777
        %v779 = vsel %vm712, %v758, 0.0
        %780 = vadd.xlane.f32.xlu0 %v779
        %v781 = vpop.xlane.xlu0 %780
        %v782 = vsel %vm712, %v760, 0.0
        %783 = vadd.xlane.f32.xlu0 %v782
        %v784 = vpop.xlane.xlu0 %783
        %v785 = vpack.c.bf16 %v748, %v746
        %v786 = vpack.c.bf16 %v752, %v750
        %v787 = vpack.c.bf16 %v756, %v754
        %v788 = vpack.c.bf16 %v760, %v758
        %v789 = vpack.c.bf16 %v419, %v415
        %v790 = vpack.c.bf16 %v429, %v425
        %v791 = vpack.c.bf16 %v439, %v435
        %v792 = vpack.c.bf16 %v449, %v445
        %v794 = vsel %vm712, %v785, 0
        %v797 = vsel %vm712, %v786, 0
        %v800 = vsel %vm712, %v787, 0
        %v803 = vsel %vm712, %v788, 0
        %805 = vmatprep.subr.bf16.mxu0 0
        %806 = vmatpush1.bf16.msra.mxu0 %v789
        %807 = vmatprep.subr.bf16.mxu0 0
        %808 = vmatpush1.bf16.msra.mxu0 %v790
        %809 = vmatprep.subr.bf16.mxu0 0
        %810 = vmatpush1.bf16.msra.mxu0 %v791
        %811 = vmatprep.subr.bf16.mxu0 0
        %812 = vmatpush1.bf16.msra.mxu0 %v792
        %813 = vmatprep.subr.bf16.mxu0 0
        %814 = vmatpush1.bf16.msra.mxu0 0
        %815 = vmatprep.subr.bf16.mxu0 0
        %816 = vmatpush1.bf16.msra.mxu0 0
        %817 = vmatprep.subr.bf16.mxu0 0
        %818 = vmatpush1.bf16.msra.mxu0 0
        %819 = vmatprep.subr.bf16.mxu0 0
        %820 = vmatpush1.bf16.msra.mxu0 0
        %821 = vmatprep.subr.bf16.mxu0 0
        %822 = vmatpush1.bf16.msra.mxu0 0
        %823 = vmatprep.subr.bf16.mxu0 0
        %824 = vmatpush1.bf16.msra.mxu0 0
        %825 = vmatprep.subr.bf16.mxu0 0
        %826 = vmatpush1.bf16.msra.mxu0 0
        %827 = vmatprep.subr.bf16.mxu0 0
        %828 = vmatpush1.bf16.msra.mxu0 0
        %829 = vmatprep.subr.bf16.mxu0 0
        %830 = vmatpush1.bf16.msra.mxu0 0
        %831 = vmatprep.subr.bf16.mxu0 0
        %832 = vmatpush1.bf16.msra.mxu0 0
        %833 = vmatprep.subr.bf16.mxu0 0
        %834 = vmatpush1.bf16.msra.mxu0 0
        %835 = vmatprep.subr.bf16.mxu0 0
        %836 = vmatpush1.bf16.msra.mxu0 0
        %837 = vmatprep.mubr.bf16.mxu0 0
        %838 = vmatmul.mubr.bf16.gmra.mrb[0].mxu0 %v794
        %v839 = vpop.f32.mrb[0].mxu0
        %v840 = vadd.f32 0.0, %v839
        %v841 = vpop.f32.mrb[0].mxu0
        %v842 = vpop.f32.mrb[0].mxu0
        %v843 = vadd.f32 0.0, %v842
        %v844 = vpop.f32.mrb[0].mxu0
        %845 = vmatprep.mubr.bf16.mxu0 0
        %846 = vmatmul.mubr.bf16.gmra.mrb[0].mxu0 %v797
        %v847 = vpop.f32.mrb[0].mxu0
        %v848 = vadd.f32 0.0, %v847
        %v849 = vpop.f32.mrb[0].mxu0
        %v850 = vpop.f32.mrb[0].mxu0
        %v851 = vadd.f32 0.0, %v850
        %v852 = vpop.f32.mrb[0].mxu0
        %853 = vmatprep.mubr.bf16.mxu0 0
        %854 = vmatmul.mubr.bf16.gmra.mrb[0].mxu0 %v800
        %v855 = vpop.f32.mrb[0].mxu0
        %v856 = vadd.f32 0.0, %v855
        %v857 = vpop.f32.mrb[0].mxu0
        %v858 = vpop.f32.mrb[0].mxu0
        %v859 = vadd.f32 0.0, %v858
        %v860 = vpop.f32.mrb[0].mxu0
        %861 = vmatprep.mubr.bf16.mxu0 0
        %862 = vmatmul.mubr.bf16.gmra.mrb[0].mxu0 %v803
        %v863 = vpop.f32.mrb[0].mxu0
        %v864 = vadd.f32 0.0, %v863
        %v865 = vpop.f32.mrb[0].mxu0
        %v866 = vpop.f32.mrb[0].mxu0
        %v867 = vadd.f32 0.0, %v866
        %v868 = vpop.f32.mrb[0].mxu0
        %869 = vdwg.mxu0
        %v870 = vrcp.pop %v763
        %v871 = vrcp.pop %v766
        %v872 = vrcp.pop %v769
        %v873 = vrcp.pop %v772
        %v874 = vrcp.pop %v775
        %v875 = vrcp.pop %v778
        %v876 = vrcp.pop %v781
        %v877 = vrcp.pop %v784
        %v878 = vmul.f32 %v840, %v870
        %v879 = vmul.f32 %v843, %v871
        %v880 = vmul.f32 %v848, %v872
        %v881 = vmul.f32 %v851, %v873
        %v882 = vmul.f32 %v856, %v874
        %v883 = vmul.f32 %v859, %v875
        %v884 = vmul.f32 %v864, %v876
        %v885 = vmul.f32 %v867, %v877
        %886 = vrot.lane.b32.xlu0 %v417, 125
        %v887 = vpop.permute.xlu0 %886
        %888 = vrot.lane.b32.xlu0 %v421, 125
        %v889 = vpop.permute.xlu0 %888
        %890 = vrot.lane.b32.xlu0 %v427, 125
        %v891 = vpop.permute.xlu0 %890
        %892 = vrot.lane.b32.xlu0 %v431, 125
        %v893 = vpop.permute.xlu0 %892
        %894 = vrot.lane.b32.xlu0 %v437, 125
        %v895 = vpop.permute.xlu0 %894
        %896 = vrot.lane.b32.xlu0 %v441, 125
        %v897 = vpop.permute.xlu0 %896
        %898 = vrot.lane.b32.xlu0 %v447, 125
        %v899 = vpop.permute.xlu0 %898
        %900 = vrot.lane.b32.xlu0 %v451, 125
        %v901 = vpop.permute.xlu0 %900
        %v910 = vsel %vm485, %v887, 1.0
        %v911 = vsel %vm485, %v889, 1.0
        %v912 = vsel %vm485, %v891, 1.0
        %v913 = vsel %vm485, %v893, 1.0
        %v914 = vsel %vm485, %v895, 1.0
        %v915 = vsel %vm485, %v897, 1.0
        %v916 = vsel %vm485, %v899, 1.0
        %v917 = vsel %vm485, %v901, 1.0
        %v918 = vsel %vm485, 1.0, %v462
        %v919 = vsel %vm485, 1.0, %v464
        %v920 = vsel %vm485, 1.0, %v466
        %v921 = vsel %vm485, 1.0, %v468
        %v922 = vsel %vm485, 1.0, %v470
        %v923 = vsel %vm485, 1.0, %v472
        %v924 = vsel %vm485, 1.0, %v474
        %v925 = vsel %vm485, 1.0, %v476
        %v927 = vsel %vm526, %v910, 0
        %v930 = vsel %vm526, %v911, 0
        %v933 = vsel %vm526, %v912, 0
        %v936 = vsel %vm526, %v913, 0
        %v939 = vsel %vm526, %v914, 0
        %v942 = vsel %vm526, %v915, 0
        %v945 = vsel %vm526, %v916, 0
        %v948 = vsel %vm526, %v917, 0
        %v951 = vsel %vm526, %v918, 0
        %v954 = vsel %vm526, %v919, 0
        %v957 = vsel %vm526, %v920, 0
        %v960 = vsel %vm526, %v921, 0
        %v963 = vsel %vm526, %v922, 0
        %v966 = vsel %vm526, %v923, 0
        %v969 = vsel %vm526, %v924, 0
        %v972 = vsel %vm526, %v925, 0
        %974 = vmatprep.subr.mxu0 0.0
        %975 = vmatpush1.xpose.msra.mxu0 %v951
        %976 = vmatprep.subr.mxu0 0.0
        %977 = vmatpush1.xpose.msra.mxu0 %v954
        %978 = vmatprep.subr.mxu0 0.0
        %979 = vmatpush1.xpose.msra.mxu0 %v957
        %980 = vmatprep.subr.mxu0 0.0
        %981 = vmatpush1.xpose.msra.mxu0 %v960
        %982 = vmatprep.subr.mxu0 0.0
        %983 = vmatpush1.xpose.msra.mxu0 %v963
        %984 = vmatprep.subr.mxu0 0.0
        %985 = vmatpush1.xpose.msra.mxu0 %v966
        %986 = vmatprep.subr.mxu0 0.0
        %987 = vmatpush1.xpose.msra.mxu0 %v969
        %988 = vmatprep.subr.mxu0 0.0
        %989 = vmatpush1.xpose.msra.mxu0 %v972
        %990 = vmatprep.subr.mxu0 0.0
        %991 = vmatpush1.xpose.msra.mxu0 0.0
        %992 = vmatprep.subr.mxu0 0.0
        %993 = vmatpush1.xpose.msra.mxu0 0.0
        %994 = vmatprep.subr.mxu0 0.0
        %995 = vmatpush1.xpose.msra.mxu0 0.0
        %996 = vmatprep.subr.mxu0 0.0
        %997 = vmatpush1.xpose.msra.mxu0 0.0
        %998 = vmatprep.subr.mxu0 0.0
        %999 = vmatpush1.xpose.msra.mxu0 0.0
        %1000 = vmatprep.subr.mxu0 0.0
        %1001 = vmatpush1.xpose.msra.mxu0 0.0
        %1002 = vmatprep.subr.mxu0 0.0
        %1003 = vmatpush1.xpose.msra.mxu0 0.0
        %1004 = vmatprep.subr.mxu0 0.0
        %1005 = vmatpush1.xpose.msra.mxu0 0.0
        %1006 = vmatprep.subr.mxu0 0.0
        %1007 = vmatpush1.xpose.msra.mxu0 0.0
        %1008 = vmatprep.subr.mxu0 0.0
        %1009 = vmatpush1.xpose.msra.mxu0 0.0
        %1010 = vmatprep.subr.mxu0 0.0
        %1011 = vmatpush1.xpose.msra.mxu0 0.0
        %1012 = vmatprep.subr.mxu0 0.0
        %1013 = vmatpush1.xpose.msra.mxu0 0.0
        %1014 = vmatprep.subr.mxu0 0.0
        %1015 = vmatpush1.xpose.msra.mxu0 0.0
        %1016 = vmatprep.subr.mxu0 0.0
        %1017 = vmatpush1.xpose.msra.mxu0 0.0
        %1018 = vmatprep.subr.mxu0 0.0
        %1019 = vmatpush1.xpose.msra.mxu0 0.0
        %1020 = vmatprep.subr.mxu0 0.0
        %1021 = vmatpush1.xpose.msra.mxu0 0.0
        %1022 = vmatprep.subr.mxu0 0.0
        %1023 = vmatpush1.xpose.msra.mxu0 0.0
        %1024 = vmatprep.subr.mxu0 0.0
        %1025 = vmatpush1.xpose.msra.mxu0 0.0
        %1026 = vmatprep.subr.mxu0 0.0
        %1027 = vmatpush1.xpose.msra.mxu0 0.0
        %1028 = vmatprep.subr.mxu0 0.0
        %1029 = vmatpush1.xpose.msra.mxu0 0.0
        %1030 = vmatprep.subr.mxu0 0.0
        %1031 = vmatpush1.xpose.msra.mxu0 0.0
        %1032 = vmatprep.subr.mxu0 0.0
        %1033 = vmatpush1.xpose.msra.mxu0 0.0
        %1034 = vmatprep.subr.mxu0 0.0
        %1035 = vmatpush1.xpose.msra.mxu0 0.0
        %1036 = vmatprep.subr.mxu0 0.0
        %1037 = vmatpush1.xpose.msra.mxu0 0.0
        %1038 = vmatprep.mubr.f32.mxu0 0.0
        %1039 = vmatmul.mubr.f32.gmra.mrb[0].mxu0 %v927
        %v1040 = vpop.f32.mrb[0].mxu0
        %v1041 = vadd.f32 0.0, %v1040
        %v1042 = vpop.f32.mrb[0].mxu0
        %1043 = vmatprep.mubr.f32.mxu0 0.0
        %1044 = vmatmul.mubr.f32.gmra.mrb[0].mxu0 %v930
        %v1045 = vpop.f32.mrb[0].mxu0
        %v1046 = vadd.f32 0.0, %v1045
        %v1047 = vpop.f32.mrb[0].mxu0
        %1048 = vmatprep.mubr.f32.mxu0 0.0
        %1049 = vmatmul.mubr.f32.gmra.mrb[0].mxu0 %v933
        %v1050 = vpop.f32.mrb[0].mxu0
        %v1051 = vadd.f32 0.0, %v1050
        %v1052 = vpop.f32.mrb[0].mxu0
        %1053 = vmatprep.mubr.f32.mxu0 0.0
        %1054 = vmatmul.mubr.f32.gmra.mrb[0].mxu0 %v936
        %v1055 = vpop.f32.mrb[0].mxu0
        %v1056 = vadd.f32 0.0, %v1055
        %v1057 = vpop.f32.mrb[0].mxu0
        %1058 = vmatprep.mubr.f32.mxu0 0.0
        %1059 = vmatmul.mubr.f32.gmra.mrb[0].mxu0 %v939
        %v1060 = vpop.f32.mrb[0].mxu0
        %v1061 = vadd.f32 0.0, %v1060
        %v1062 = vpop.f32.mrb[0].mxu0
        %1063 = vmatprep.mubr.f32.mxu0 0.0
        %1064 = vmatmul.mubr.f32.gmra.mrb[0].mxu0 %v942
        %v1065 = vpop.f32.mrb[0].mxu0
        %v1066 = vadd.f32 0.0, %v1065
        %v1067 = vpop.f32.mrb[0].mxu0
        %1068 = vmatprep.mubr.f32.mxu0 0.0
        %1069 = vmatmul.mubr.f32.gmra.mrb[0].mxu0 %v945
        %v1070 = vpop.f32.mrb[0].mxu0
        %v1071 = vadd.f32 0.0, %v1070
        %v1072 = vpop.f32.mrb[0].mxu0
        %1073 = vmatprep.mubr.f32.mxu0 0.0
        %1074 = vmatmul.mubr.f32.gmra.mrb[0].mxu0 %v948
        %v1075 = vpop.f32.mrb[0].mxu0
        %v1076 = vadd.f32 0.0, %v1075
        %v1077 = vpop.f32.mrb[0].mxu0
        %1078 = vdwg.mxu0
        %vm1079 = vcmp.gt.f32.partialorder %v1041, 0.0
        %vm1080 = vcmp.gt.f32.partialorder %v1046, 0.0
        %vm1081 = vcmp.gt.f32.partialorder %v1051, 0.0
        %vm1082 = vcmp.gt.f32.partialorder %v1056, 0.0
        %vm1083 = vcmp.gt.f32.partialorder %v1061, 0.0
        %vm1084 = vcmp.gt.f32.partialorder %v1066, 0.0
        %vm1085 = vcmp.gt.f32.partialorder %v1071, 0.0
        %vm1086 = vcmp.gt.f32.partialorder %v1076, 0.0
        %v1087 = vmul.f32 %v1041, 0.2
        %v1088 = vmul.f32 %v1046, 0.2
        %v1089 = vmul.f32 %v1051, 0.2
        %v1090 = vmul.f32 %v1056, 0.2
        %v1091 = vmul.f32 %v1061, 0.2
        %v1092 = vmul.f32 %v1066, 0.2
        %v1093 = vmul.f32 %v1071, 0.2
        %v1094 = vmul.f32 %v1076, 0.2
        %v1095 = vsel %vm1079, %v1041, %v1087
        %v1096 = vsel %vm1080, %v1046, %v1088
        %v1097 = vsel %vm1081, %v1051, %v1089
        %v1098 = vsel %vm1082, %v1056, %v1090
        %v1099 = vsel %vm1083, %v1061, %v1091
        %v1100 = vsel %vm1084, %v1066, %v1092
        %v1101 = vsel %vm1085, %v1071, %v1093
        %v1102 = vsel %vm1086, %v1076, %v1094
        %v1103 = vsel %vm319, %v1095, -1e+09
        %v1104 = vsel %vm320, %v1096, -1e+09
        %v1105 = vsel %vm321, %v1097, -1e+09
        %v1106 = vsel %vm322, %v1098, -1e+09
        %v1107 = vsel %vm323, %v1099, -1e+09
        %v1108 = vsel %vm324, %v1100, -1e+09
        %v1109 = vsel %vm325, %v1101, -1e+09
        %v1110 = vsel %vm326, %v1102, -1e+09
        %v1111 = vsel %vm712, %v1103, -inf
        %1112 = vmax.xlane.f32.xlu0 %v1111
        %v1113 = vpop.xlane.xlu0 %1112
        %v1114 = vsel %vm712, %v1104, -inf
        %1115 = vmax.xlane.f32.xlu0 %v1114
        %v1116 = vpop.xlane.xlu0 %1115
        %v1117 = vsel %vm712, %v1105, -inf
        %1118 = vmax.xlane.f32.xlu0 %v1117
        %v1119 = vpop.xlane.xlu0 %1118
        %v1120 = vsel %vm712, %v1106, -inf
        %1121 = vmax.xlane.f32.xlu0 %v1120
        %v1122 = vpop.xlane.xlu0 %1121
        %v1123 = vsel %vm712, %v1107, -inf
        %1124 = vmax.xlane.f32.xlu0 %v1123
        %v1125 = vpop.xlane.xlu0 %1124
        %v1126 = vsel %vm712, %v1108, -inf
        %1127 = vmax.xlane.f32.xlu0 %v1126
        %v1128 = vpop.xlane.xlu0 %1127
        %v1129 = vsel %vm712, %v1109, -inf
        %1130 = vmax.xlane.f32.xlu0 %v1129
        %v1131 = vpop.xlane.xlu0 %1130
        %v1132 = vsel %vm712, %v1110, -inf
        %1133 = vmax.xlane.f32.xlu0 %v1132
        %v1134 = vpop.xlane.xlu0 %1133
        %v1135 = vsub.f32 %v1103, %v1113
        %v1136 = vsub.f32 %v1104, %v1116
        %v1137 = vsub.f32 %v1105, %v1119
        %v1138 = vsub.f32 %v1106, %v1122
        %v1139 = vsub.f32 %v1107, %v1125
        %v1140 = vsub.f32 %v1108, %v1128
        %v1141 = vsub.f32 %v1109, %v1131
        %v1142 = vsub.f32 %v1110, %v1134
        %v1143 = vmul.f32 %v1135, 1.442695
        %v1144 = vpow.pop %v1143
        %v1145 = vmul.f32 %v1136, 1.442695
        %v1146 = vpow.pop %v1145
        %v1147 = vmul.f32 %v1137, 1.442695
        %v1148 = vpow.pop %v1147
        %v1149 = vmul.f32 %v1138, 1.442695
        %v1150 = vpow.pop %v1149
        %v1151 = vmul.f32 %v1139, 1.442695
        %v1152 = vpow.pop %v1151
        %v1153 = vmul.f32 %v1140, 1.442695
        %v1154 = vpow.pop %v1153
        %v1155 = vmul.f32 %v1141, 1.442695
        %v1156 = vpow.pop %v1155
        %v1157 = vmul.f32 %v1142, 1.442695
        %v1158 = vpow.pop %v1157
        %v1159 = vsel %vm712, %v1144, 0.0
        %1160 = vadd.xlane.f32.xlu0 %v1159
        %v1161 = vpop.xlane.xlu0 %1160
        %v1162 = vsel %vm712, %v1146, 0.0
        %1163 = vadd.xlane.f32.xlu0 %v1162
        %v1164 = vpop.xlane.xlu0 %1163
        %v1165 = vsel %vm712, %v1148, 0.0
        %1166 = vadd.xlane.f32.xlu0 %v1165
        %v1167 = vpop.xlane.xlu0 %1166
        %v1168 = vsel %vm712, %v1150, 0.0
        %1169 = vadd.xlane.f32.xlu0 %v1168
        %v1170 = vpop.xlane.xlu0 %1169
        %v1171 = vsel %vm712, %v1152, 0.0
        %1172 = vadd.xlane.f32.xlu0 %v1171
        %v1173 = vpop.xlane.xlu0 %1172
        %v1174 = vsel %vm712, %v1154, 0.0
        %1175 = vadd.xlane.f32.xlu0 %v1174
        %v1176 = vpop.xlane.xlu0 %1175
        %v1177 = vsel %vm712, %v1156, 0.0
        %1178 = vadd.xlane.f32.xlu0 %v1177
        %v1179 = vpop.xlane.xlu0 %1178
        %v1180 = vsel %vm712, %v1158, 0.0
        %1181 = vadd.xlane.f32.xlu0 %v1180
        %v1182 = vpop.xlane.xlu0 %1181
        %v1183 = vpack.c.bf16 %v1146, %v1144
        %v1184 = vpack.c.bf16 %v1150, %v1148
        %v1185 = vpack.c.bf16 %v1154, %v1152
        %v1186 = vpack.c.bf16 %v1158, %v1156
        %1191 = vrot.lane.b32.xlu0 %v789, 64
        %v1192 = vpop.permute.xlu0 %1191
        %1193 = vrot.lane.b32.xlu0 %v790, 64
        %v1194 = vpop.permute.xlu0 %1193
        %1195 = vrot.lane.b32.xlu0 %v791, 64
        %v1196 = vpop.permute.xlu0 %1195
        %1197 = vrot.lane.b32.xlu0 %v792, 64
        %v1198 = vpop.permute.xlu0 %1197
        %v1204 = vsel %vm712, %v1183, 0
        %v1207 = vsel %vm712, %v1184, 0
        %v1210 = vsel %vm712, %v1185, 0
        %v1213 = vsel %vm712, %v1186, 0
        %1215 = vmatprep.subr.bf16.mxu0 0
        %1216 = vmatpush1.bf16.msra.mxu0 %v1192
        %1217 = vmatprep.subr.bf16.mxu0 0
        %1218 = vmatpush1.bf16.msra.mxu0 %v1194
        %1219 = vmatprep.subr.bf16.mxu0 0
        %1220 = vmatpush1.bf16.msra.mxu0 %v1196
        %1221 = vmatprep.subr.bf16.mxu0 0
        %1222 = vmatpush1.bf16.msra.mxu0 %v1198
        %1223 = vmatprep.subr.bf16.mxu0 0
        %1224 = vmatpush1.bf16.msra.mxu0 0
        %1225 = vmatprep.subr.bf16.mxu0 0
        %1226 = vmatpush1.bf16.msra.mxu0 0
        %1227 = vmatprep.subr.bf16.mxu0 0
        %1228 = vmatpush1.bf16.msra.mxu0 0
        %1229 = vmatprep.subr.bf16.mxu0 0
        %1230 = vmatpush1.bf16.msra.mxu0 0
        %1231 = vmatprep.subr.bf16.mxu0 0
        %1232 = vmatpush1.bf16.msra.mxu0 0
        %1233 = vmatprep.subr.bf16.mxu0 0
        %1234 = vmatpush1.bf16.msra.mxu0 0
        %1235 = vmatprep.subr.bf16.mxu0 0
        %1236 = vmatpush1.bf16.msra.mxu0 0
        %1237 = vmatprep.subr.bf16.mxu0 0
        %1238 = vmatpush1.bf16.msra.mxu0 0
        %1239 = vmatprep.subr.bf16.mxu0 0
        %1240 = vmatpush1.bf16.msra.mxu0 0
        %1241 = vmatprep.subr.bf16.mxu0 0
        %1242 = vmatpush1.bf16.msra.mxu0 0
        %1243 = vmatprep.subr.bf16.mxu0 0
        %1244 = vmatpush1.bf16.msra.mxu0 0
        %1245 = vmatprep.subr.bf16.mxu0 0
        %1246 = vmatpush1.bf16.msra.mxu0 0
        %1247 = vmatprep.mubr.bf16.mxu0 0
        %1248 = vmatmul.mubr.bf16.gmra.mrb[0].mxu0 %v1204
        %v1249 = vpop.f32.mrb[0].mxu0
        %v1250 = vadd.f32 0.0, %v1249
        %v1251 = vpop.f32.mrb[0].mxu0
        %v1252 = vpop.f32.mrb[0].mxu0
        %v1253 = vadd.f32 0.0, %v1252
        %v1254 = vpop.f32.mrb[0].mxu0
        %1255 = vmatprep.mubr.bf16.mxu0 0
        %1256 = vmatmul.mubr.bf16.gmra.mrb[0].mxu0 %v1207
        %v1257 = vpop.f32.mrb[0].mxu0
        %v1258 = vadd.f32 0.0, %v1257
        %v1259 = vpop.f32.mrb[0].mxu0
        %v1260 = vpop.f32.mrb[0].mxu0
        %v1261 = vadd.f32 0.0, %v1260
        %v1262 = vpop.f32.mrb[0].mxu0
        %1263 = vmatprep.mubr.bf16.mxu0 0
        %1264 = vmatmul.mubr.bf16.gmra.mrb[0].mxu0 %v1210
        %v1265 = vpop.f32.mrb[0].mxu0
        %v1266 = vadd.f32 0.0, %v1265
        %v1267 = vpop.f32.mrb[0].mxu0
        %v1268 = vpop.f32.mrb[0].mxu0
        %v1269 = vadd.f32 0.0, %v1268
        %v1270 = vpop.f32.mrb[0].mxu0
        %1271 = vmatprep.mubr.bf16.mxu0 0
        %1272 = vmatmul.mubr.bf16.gmra.mrb[0].mxu0 %v1213
        %v1273 = vpop.f32.mrb[0].mxu0
        %v1274 = vadd.f32 0.0, %v1273
        %v1275 = vpop.f32.mrb[0].mxu0
        %v1276 = vpop.f32.mrb[0].mxu0
        %v1277 = vadd.f32 0.0, %v1276
        %v1278 = vpop.f32.mrb[0].mxu0
        %1279 = vdwg.mxu0
        %v1280 = vrcp.pop %v1161
        %v1281 = vrcp.pop %v1164
        %v1282 = vrcp.pop %v1167
        %v1283 = vrcp.pop %v1170
        %v1284 = vrcp.pop %v1173
        %v1285 = vrcp.pop %v1176
        %v1286 = vrcp.pop %v1179
        %v1287 = vrcp.pop %v1182
        %v1288 = vmul.f32 %v1250, %v1280
        %v1289 = vmul.f32 %v1253, %v1281
        %v1290 = vmul.f32 %v1258, %v1282
        %v1291 = vmul.f32 %v1261, %v1283
        %v1292 = vmul.f32 %v1266, %v1284
        %v1293 = vmul.f32 %v1269, %v1285
        %v1294 = vmul.f32 %v1274, %v1286
        %v1295 = vmul.f32 %v1277, %v1287
        %v1296 = vld [vmem:[%s4] sm:$0x1]
        %v1297 = vlaneseq
        %v1298 = vshrl.u32 %v1297, 7
        %v1299 = vsub.s32 0, %v1298
        %v1300 = vrot.slane %v1296, %v1299
        %v1301 = vadd.f32 %v878, %v1300
        %v1302 = vadd.f32 %v879, %v1300
        %v1303 = vadd.f32 %v880, %v1300
        %v1304 = vadd.f32 %v881, %v1300
        %v1305 = vadd.f32 %v882, %v1300
        %v1306 = vadd.f32 %v883, %v1300
        %v1307 = vadd.f32 %v884, %v1300
        %v1308 = vadd.f32 %v885, %v1300
        %v1309 = vmax.f32 %v1301, 0.0
        %v1310 = vmax.f32 %v1302, 0.0
        %v1311 = vmax.f32 %v1303, 0.0
        %v1312 = vmax.f32 %v1304, 0.0
        %v1313 = vmax.f32 %v1305, 0.0
        %v1314 = vmax.f32 %v1306, 0.0
        %v1315 = vmax.f32 %v1307, 0.0
        %v1316 = vmax.f32 %v1308, 0.0
        %v1317 = vmul.f32 %v1309, %v339
        %v1318 = vmul.f32 %v1310, %v340
        %v1319 = vmul.f32 %v1311, %v341
        %v1320 = vmul.f32 %v1312, %v342
        %v1321 = vmul.f32 %v1313, %v343
        %v1322 = vmul.f32 %v1314, %v344
        %v1323 = vmul.f32 %v1315, %v345
        %v1324 = vmul.f32 %v1316, %v346
        %v1325 = vld [vmem:[%s4 + $0x1] sm:$0x1]
        %v1326 = vlaneseq
        %v1327 = vshrl.u32 %v1326, 7
        %v1328 = vsub.s32 0, %v1327
        %v1329 = vrot.slane %v1325, %v1328
        %v1330 = vadd.f32 %v1288, %v1329
        %v1331 = vadd.f32 %v1289, %v1329
        %v1332 = vadd.f32 %v1290, %v1329
        %v1333 = vadd.f32 %v1291, %v1329
        %v1334 = vadd.f32 %v1292, %v1329
        %v1335 = vadd.f32 %v1293, %v1329
        %v1336 = vadd.f32 %v1294, %v1329
        %v1337 = vadd.f32 %v1295, %v1329
        %v1338 = vmax.f32 %v1330, 0.0
        %v1339 = vmax.f32 %v1331, 0.0
        %v1340 = vmax.f32 %v1332, 0.0
        %v1341 = vmax.f32 %v1333, 0.0
        %v1342 = vmax.f32 %v1334, 0.0
        %v1343 = vmax.f32 %v1335, 0.0
        %v1344 = vmax.f32 %v1336, 0.0
        %v1345 = vmax.f32 %v1337, 0.0
        %v1346 = vmul.f32 %v1338, %v347
        %v1347 = vmul.f32 %v1339, %v348
        %v1348 = vmul.f32 %v1340, %v349
        %v1349 = vmul.f32 %v1341, %v350
        %v1350 = vmul.f32 %v1342, %v351
        %v1351 = vmul.f32 %v1343, %v352
        %v1352 = vmul.f32 %v1344, %v353
        %v1353 = vmul.f32 %v1345, %v354
        %v1354 = vpack.c.bf16 %v1318, %v1317
        %v1355 = vpack.c.bf16 %v1320, %v1319
        %v1356 = vpack.c.bf16 %v1322, %v1321
        %v1357 = vpack.c.bf16 %v1324, %v1323
        %v1358 = vld [vmem:[#allocation4 + $0x10] sm:$0xff]
        %v1359 = vld [vmem:[#allocation4 + $0x18] sm:$0xff]
        %v1360 = vld [vmem:[#allocation4 + $0x20] sm:$0xff]
        %v1361 = vld [vmem:[#allocation4 + $0x28] sm:$0xff]
        %v1362 = vld [vmem:[#allocation4 + $0x30] sm:$0xff]
        %v1363 = vld [vmem:[#allocation4 + $0x38] sm:$0xff]
        %v1364 = vld [vmem:[#allocation4 + $0x40] sm:$0xff]
        %v1365 = vld [vmem:[#allocation4 + $0x48] sm:$0xff]
        %v1366 = vpack.c.bf16 %v1347, %v1346
        %v1367 = vpack.c.bf16 %v1349, %v1348
        %v1368 = vpack.c.bf16 %v1351, %v1350
        %v1369 = vpack.c.bf16 %v1353, %v1352
        %v1370 = vld [vmem:[#allocation4 + $0x50] sm:$0xff]
        %v1371 = vld [vmem:[#allocation4 + $0x58] sm:$0xff]
        %v1372 = vld [vmem:[#allocation4 + $0x60] sm:$0xff]
        %v1373 = vld [vmem:[#allocation4 + $0x68] sm:$0xff]
        %v1374 = vld [vmem:[#allocation4 + $0x70] sm:$0xff]
        %v1375 = vld [vmem:[#allocation4 + $0x78] sm:$0xff]
        %v1376 = vld [vmem:[#allocation4 + $0x80] sm:$0xff]
        %v1377 = vld [vmem:[#allocation4 + $0x88] sm:$0xff]
        %v1386 = vunpack.c.l.b16 %v1370
        %v1387 = vunpack.c.h.b16 %v1370
        %v1388 = vunpack.c.l.b16 %v1371
        %v1389 = vunpack.c.h.b16 %v1371
        %v1390 = vunpack.c.l.b16 %v1372
        %v1391 = vunpack.c.h.b16 %v1372
        %v1392 = vunpack.c.l.b16 %v1373
        %v1393 = vunpack.c.h.b16 %v1373
        %v1394 = vunpack.c.l.b16 %v1374
        %v1395 = vunpack.c.h.b16 %v1374
        %v1396 = vunpack.c.l.b16 %v1375
        %v1397 = vunpack.c.h.b16 %v1375
        %v1398 = vunpack.c.l.b16 %v1376
        %v1399 = vunpack.c.h.b16 %v1376
        %v1400 = vunpack.c.l.b16 %v1377
        %v1401 = vunpack.c.h.b16 %v1377
        %v1402 = vpack.c.b16 %v1388, %v1386
        %v1403 = vpack.c.b16 %v1389, %v1387
        %v1404 = vpack.c.b16 %v1392, %v1390
        %v1405 = vpack.c.b16 %v1393, %v1391
        %v1406 = vpack.c.b16 %v1396, %v1394
        %v1407 = vpack.c.b16 %v1397, %v1395
        %v1408 = vpack.c.b16 %v1400, %v1398
        %v1409 = vpack.c.b16 %v1401, %v1399
        %v1419 = vsel %vm712, %v1366, 0
        %v1422 = vsel %vm712, %v1367, 0
        %v1425 = vsel %vm712, %v1368, 0
        %v1428 = vsel %vm712, %v1369, 0
        %1430 = vmatprep.subr.bf16.mxu0 %v1403
        %1431 = vmatpush1.bf16.msra.mxu0 %v1402
        %1432 = vmatprep.subr.bf16.mxu0 %v1405
        %1433 = vmatpush1.bf16.msra.mxu0 %v1404
        %1434 = vmatprep.subr.bf16.mxu0 %v1407
        %1435 = vmatpush1.bf16.msra.mxu0 %v1406
        %1436 = vmatprep.subr.bf16.mxu0 %v1409
        %1437 = vmatpush1.bf16.msra.mxu0 %v1408
        %1438 = vmatprep.subr.bf16.mxu0 0
        %1439 = vmatpush1.bf16.msra.mxu0 0
        %1440 = vmatprep.subr.bf16.mxu0 0
        %1441 = vmatpush1.bf16.msra.mxu0 0
        %1442 = vmatprep.subr.bf16.mxu0 0
        %1443 = vmatpush1.bf16.msra.mxu0 0
        %1444 = vmatprep.subr.bf16.mxu0 0
        %1445 = vmatpush1.bf16.msra.mxu0 0
        %1446 = vmatprep.subr.bf16.mxu0 0
        %1447 = vmatpush1.bf16.msra.mxu0 0
        %1448 = vmatprep.subr.bf16.mxu0 0
        %1449 = vmatpush1.bf16.msra.mxu0 0
        %1450 = vmatprep.subr.bf16.mxu0 0
        %1451 = vmatpush1.bf16.msra.mxu0 0
        %1452 = vmatprep.subr.bf16.mxu0 0
        %1453 = vmatpush1.bf16.msra.mxu0 0
        %1454 = vmatprep.subr.bf16.mxu0 0
        %1455 = vmatpush1.bf16.msra.mxu0 0
        %1456 = vmatprep.subr.bf16.mxu0 0
        %1457 = vmatpush1.bf16.msra.mxu0 0
        %1458 = vmatprep.subr.bf16.mxu0 0
        %1459 = vmatpush1.bf16.msra.mxu0 0
        %1460 = vmatprep.subr.bf16.mxu0 0
        %1461 = vmatpush1.bf16.msra.mxu0 0
        %1462 = vmatprep.mubr.bf16.mxu0 0
        %1463 = vmatmul.mubr.bf16.gmra.mrb[0].mxu0 %v1419
        %v1464 = vpop.f32.mrb[0].mxu0
        %v1465 = vadd.f32 0.0, %v1464
        %v1466 = vpop.f32.mrb[0].mxu0
        %v1467 = vpop.f32.mrb[0].mxu0
        %v1468 = vadd.f32 0.0, %v1467
        %v1469 = vpop.f32.mrb[0].mxu0
        %1470 = vmatprep.mubr.bf16.mxu0 0
        %1471 = vmatmul.mubr.bf16.gmra.mrb[0].mxu0 %v1422
        %v1472 = vpop.f32.mrb[0].mxu0
        %v1473 = vadd.f32 0.0, %v1472
        %v1474 = vpop.f32.mrb[0].mxu0
        %v1475 = vpop.f32.mrb[0].mxu0
        %v1476 = vadd.f32 0.0, %v1475
        %v1477 = vpop.f32.mrb[0].mxu0
        %1478 = vmatprep.mubr.bf16.mxu0 0
        %1479 = vmatmul.mubr.bf16.gmra.mrb[0].mxu0 %v1425
        %v1480 = vpop.f32.mrb[0].mxu0
        %v1481 = vadd.f32 0.0, %v1480
        %v1482 = vpop.f32.mrb[0].mxu0
        %v1483 = vpop.f32.mrb[0].mxu0
        %v1484 = vadd.f32 0.0, %v1483
        %v1485 = vpop.f32.mrb[0].mxu0
        %1486 = vmatprep.mubr.bf16.mxu0 0
        %1487 = vmatmul.mubr.bf16.gmra.mrb[0].mxu0 %v1428
        %v1488 = vpop.f32.mrb[0].mxu0
        %v1489 = vadd.f32 0.0, %v1488
        %v1490 = vpop.f32.mrb[0].mxu0
        %v1491 = vpop.f32.mrb[0].mxu0
        %v1492 = vadd.f32 0.0, %v1491
        %v1493 = vpop.f32.mrb[0].mxu0
        %1494 = vdwg.mxu0
        %v1503 = vunpack.c.l.b16 %v1358
        %v1504 = vunpack.c.h.b16 %v1358
        %v1505 = vunpack.c.l.b16 %v1359
        %v1506 = vunpack.c.h.b16 %v1359
        %v1507 = vunpack.c.l.b16 %v1360
        %v1508 = vunpack.c.h.b16 %v1360
        %v1509 = vunpack.c.l.b16 %v1361
        %v1510 = vunpack.c.h.b16 %v1361
        %v1511 = vunpack.c.l.b16 %v1362
        %v1512 = vunpack.c.h.b16 %v1362
        %v1513 = vunpack.c.l.b16 %v1363
        %v1514 = vunpack.c.h.b16 %v1363
        %v1515 = vunpack.c.l.b16 %v1364
        %v1516 = vunpack.c.h.b16 %v1364
        %v1517 = vunpack.c.l.b16 %v1365
        %v1518 = vunpack.c.h.b16 %v1365
        %v1519 = vpack.c.b16 %v1505, %v1503
        %v1520 = vpack.c.b16 %v1506, %v1504
        %v1521 = vpack.c.b16 %v1509, %v1507
        %v1522 = vpack.c.b16 %v1510, %v1508
        %v1523 = vpack.c.b16 %v1513, %v1511
        %v1524 = vpack.c.b16 %v1514, %v1512
        %v1525 = vpack.c.b16 %v1517, %v1515
        %v1526 = vpack.c.b16 %v1518, %v1516
        %v1536 = vsel %vm712, %v1354, 0
        %v1539 = vsel %vm712, %v1355, 0
        %v1542 = vsel %vm712, %v1356, 0
        %v1545 = vsel %vm712, %v1357, 0
        %1547 = vmatprep.subr.bf16.mxu0 %v1520
        %1548 = vmatpush1.bf16.msra.mxu0 %v1519
        %1549 = vmatprep.subr.bf16.mxu0 %v1522
        %1550 = vmatpush1.bf16.msra.mxu0 %v1521
        %1551 = vmatprep.subr.bf16.mxu0 %v1524
        %1552 = vmatpush1.bf16.msra.mxu0 %v1523
        %1553 = vmatprep.subr.bf16.mxu0 %v1526
        %1554 = vmatpush1.bf16.msra.mxu0 %v1525
        %1555 = vmatprep.subr.bf16.mxu0 0
        %1556 = vmatpush1.bf16.msra.mxu0 0
        %1557 = vmatprep.subr.bf16.mxu0 0
        %1558 = vmatpush1.bf16.msra.mxu0 0
        %1559 = vmatprep.subr.bf16.mxu0 0
        %1560 = vmatpush1.bf16.msra.mxu0 0
        %1561 = vmatprep.subr.bf16.mxu0 0
        %1562 = vmatpush1.bf16.msra.mxu0 0
        %1563 = vmatprep.subr.bf16.mxu0 0
        %1564 = vmatpush1.bf16.msra.mxu0 0
        %1565 = vmatprep.subr.bf16.mxu0 0
        %1566 = vmatpush1.bf16.msra.mxu0 0
        %1567 = vmatprep.subr.bf16.mxu0 0
        %1568 = vmatpush1.bf16.msra.mxu0 0
        %1569 = vmatprep.subr.bf16.mxu0 0
        %1570 = vmatpush1.bf16.msra.mxu0 0
        %1571 = vmatprep.subr.bf16.mxu0 0
        %1572 = vmatpush1.bf16.msra.mxu0 0
        %1573 = vmatprep.subr.bf16.mxu0 0
        %1574 = vmatpush1.bf16.msra.mxu0 0
        %1575 = vmatprep.subr.bf16.mxu0 0
        %1576 = vmatpush1.bf16.msra.mxu0 0
        %1577 = vmatprep.subr.bf16.mxu0 0
        %1578 = vmatpush1.bf16.msra.mxu0 0
        %1579 = vmatprep.mubr.bf16.mxu0 0
        %1580 = vmatmul.mubr.bf16.gmra.mrb[0].mxu0 %v1536
        %v1581 = vpop.f32.mrb[0].mxu0
        %v1582 = vadd.f32 %v1465, %v1581
        %v1583 = vpop.f32.mrb[0].mxu0
        %v1584 = vpop.f32.mrb[0].mxu0
        %v1585 = vadd.f32 %v1468, %v1584
        %v1586 = vpop.f32.mrb[0].mxu0
        %1587 = vmatprep.mubr.bf16.mxu0 0
        %1588 = vmatmul.mubr.bf16.gmra.mrb[0].mxu0 %v1539
        %v1589 = vpop.f32.mrb[0].mxu0
        %v1590 = vadd.f32 %v1473, %v1589
        %v1591 = vpop.f32.mrb[0].mxu0
        %v1592 = vpop.f32.mrb[0].mxu0
        %v1593 = vadd.f32 %v1476, %v1592
        %v1594 = vpop.f32.mrb[0].mxu0
        %1595 = vmatprep.mubr.bf16.mxu0 0
        %1596 = vmatmul.mubr.bf16.gmra.mrb[0].mxu0 %v1542
        %v1597 = vpop.f32.mrb[0].mxu0
        %v1598 = vadd.f32 %v1481, %v1597
        %v1599 = vpop.f32.mrb[0].mxu0
        %v1600 = vpop.f32.mrb[0].mxu0
        %v1601 = vadd.f32 %v1484, %v1600
        %v1602 = vpop.f32.mrb[0].mxu0
        %1603 = vmatprep.mubr.bf16.mxu0 0
        %1604 = vmatmul.mubr.bf16.gmra.mrb[0].mxu0 %v1545
        %v1605 = vpop.f32.mrb[0].mxu0
        %v1606 = vadd.f32 %v1489, %v1605
        %v1607 = vpop.f32.mrb[0].mxu0
        %v1608 = vpop.f32.mrb[0].mxu0
        %v1609 = vadd.f32 %v1492, %v1608
        %v1610 = vpop.f32.mrb[0].mxu0
        %1611 = vdwg.mxu0
        %1620 = vrot.lane.b32.xlu0 %v1582, 63
        %v1621 = vpop.permute.xlu0 %1620
        %1622 = vrot.lane.b32.xlu0 %v1585, 63
        %v1623 = vpop.permute.xlu0 %1622
        %1624 = vrot.lane.b32.xlu0 %v1590, 63
        %v1625 = vpop.permute.xlu0 %1624
        %1626 = vrot.lane.b32.xlu0 %v1593, 63
        %v1627 = vpop.permute.xlu0 %1626
        %1628 = vrot.lane.b32.xlu0 %v1598, 63
        %v1629 = vpop.permute.xlu0 %1628
        %1630 = vrot.lane.b32.xlu0 %v1601, 63
        %v1631 = vpop.permute.xlu0 %1630
        %1632 = vrot.lane.b32.xlu0 %v1606, 63
        %v1633 = vpop.permute.xlu0 %1632
        %1634 = vrot.lane.b32.xlu0 %v1609, 63
        %v1635 = vpop.permute.xlu0 %1634
        %v1644 = vsel %vm485, %v1621, 1.0
        %v1645 = vsel %vm485, %v1623, 1.0
        %v1646 = vsel %vm485, %v1625, 1.0
        %v1647 = vsel %vm485, %v1627, 1.0
        %v1648 = vsel %vm485, %v1629, 1.0
        %v1649 = vsel %vm485, %v1631, 1.0
        %v1650 = vsel %vm485, %v1633, 1.0
        %v1651 = vsel %vm485, %v1635, 1.0
        %1652 = vrot.lane.b32.xlu0 %v1582, 65
        %v1653 = vpop.permute.xlu0 %1652
        %1654 = vrot.lane.b32.xlu0 %v1585, 65
        %v1655 = vpop.permute.xlu0 %1654
        %1656 = vrot.lane.b32.xlu0 %v1590, 65
        %v1657 = vpop.permute.xlu0 %1656
        %1658 = vrot.lane.b32.xlu0 %v1593, 65
        %v1659 = vpop.permute.xlu0 %1658
        %1660 = vrot.lane.b32.xlu0 %v1598, 65
        %v1661 = vpop.permute.xlu0 %1660
        %1662 = vrot.lane.b32.xlu0 %v1601, 65
        %v1663 = vpop.permute.xlu0 %1662
        %1664 = vrot.lane.b32.xlu0 %v1606, 65
        %v1665 = vpop.permute.xlu0 %1664
        %1666 = vrot.lane.b32.xlu0 %v1609, 65
        %v1667 = vpop.permute.xlu0 %1666
        %v1676 = vsel %vm485, 1.0, %v1653
        %v1677 = vsel %vm485, 1.0, %v1655
        %v1678 = vsel %vm485, 1.0, %v1657
        %v1679 = vsel %vm485, 1.0, %v1659
        %v1680 = vsel %vm485, 1.0, %v1661
        %v1681 = vsel %vm485, 1.0, %v1663
        %v1682 = vsel %vm485, 1.0, %v1665
        %v1683 = vsel %vm485, 1.0, %v1667
        %v1685 = vsel %vm526, %v1644, 0
        %v1688 = vsel %vm526, %v1645, 0
        %v1691 = vsel %vm526, %v1646, 0
        %v1694 = vsel %vm526, %v1647, 0
        %v1697 = vsel %vm526, %v1648, 0
        %v1700 = vsel %vm526, %v1649, 0
        %v1703 = vsel %vm526, %v1650, 0
        %v1706 = vsel %vm526, %v1651, 0
        %v1709 = vsel %vm526, %v1676, 0
        %v1712 = vsel %vm526, %v1677, 0
        %v1715 = vsel %vm526, %v1678, 0
        %v1718 = vsel %vm526, %v1679, 0
        %v1721 = vsel %vm526, %v1680, 0
        %v1724 = vsel %vm526, %v1681, 0
        %v1727 = vsel %vm526, %v1682, 0
        %v1730 = vsel %vm526, %v1683, 0
        %1732 = vmatprep.subr.mxu0 0.0
        %1733 = vmatpush1.xpose.msra.mxu0 %v1709
        %1734 = vmatprep.subr.mxu0 0.0
        %1735 = vmatpush1.xpose.msra.mxu0 %v1712
        %1736 = vmatprep.subr.mxu0 0.0
        %1737 = vmatpush1.xpose.msra.mxu0 %v1715
        %1738 = vmatprep.subr.mxu0 0.0
        %1739 = vmatpush1.xpose.msra.mxu0 %v1718
        %1740 = vmatprep.subr.mxu0 0.0
        %1741 = vmatpush1.xpose.msra.mxu0 %v1721
        %1742 = vmatprep.subr.mxu0 0.0
        %1743 = vmatpush1.xpose.msra.mxu0 %v1724
        %1744 = vmatprep.subr.mxu0 0.0
        %1745 = vmatpush1.xpose.msra.mxu0 %v1727
        %1746 = vmatprep.subr.mxu0 0.0
        %1747 = vmatpush1.xpose.msra.mxu0 %v1730
        %1748 = vmatprep.subr.mxu0 0.0
        %1749 = vmatpush1.xpose.msra.mxu0 0.0
        %1750 = vmatprep.subr.mxu0 0.0
        %1751 = vmatpush1.xpose.msra.mxu0 0.0
        %1752 = vmatprep.subr.mxu0 0.0
        %1753 = vmatpush1.xpose.msra.mxu0 0.0
        %1754 = vmatprep.subr.mxu0 0.0
        %1755 = vmatpush1.xpose.msra.mxu0 0.0
        %1756 = vmatprep.subr.mxu0 0.0
        %1757 = vmatpush1.xpose.msra.mxu0 0.0
        %1758 = vmatprep.subr.mxu0 0.0
        %1759 = vmatpush1.xpose.msra.mxu0 0.0
        %1760 = vmatprep.subr.mxu0 0.0
        %1761 = vmatpush1.xpose.msra.mxu0 0.0
        %1762 = vmatprep.subr.mxu0 0.0
        %1763 = vmatpush1.xpose.msra.mxu0 0.0
        %1764 = vmatprep.subr.mxu0 0.0
        %1765 = vmatpush1.xpose.msra.mxu0 0.0
        %1766 = vmatprep.subr.mxu0 0.0
        %1767 = vmatpush1.xpose.msra.mxu0 0.0
        %1768 = vmatprep.subr.mxu0 0.0
        %1769 = vmatpush1.xpose.msra.mxu0 0.0
        %1770 = vmatprep.subr.mxu0 0.0
        %1771 = vmatpush1.xpose.msra.mxu0 0.0
        %1772 = vmatprep.subr.mxu0 0.0
        %1773 = vmatpush1.xpose.msra.mxu0 0.0
        %1774 = vmatprep.subr.mxu0 0.0
        %1775 = vmatpush1.xpose.msra.mxu0 0.0
        %1776 = vmatprep.subr.mxu0 0.0
        %1777 = vmatpush1.xpose.msra.mxu0 0.0
        %1778 = vmatprep.subr.mxu0 0.0
        %1779 = vmatpush1.xpose.msra.mxu0 0.0
        %1780 = vmatprep.subr.mxu0 0.0
        %1781 = vmatpush1.xpose.msra.mxu0 0.0
        %1782 = vmatprep.subr.mxu0 0.0
        %1783 = vmatpush1.xpose.msra.mxu0 0.0
        %1784 = vmatprep.subr.mxu0 0.0
        %1785 = vmatpush1.xpose.msra.mxu0 0.0
        %1786 = vmatprep.subr.mxu0 0.0
        %1787 = vmatpush1.xpose.msra.mxu0 0.0
        %1788 = vmatprep.subr.mxu0 0.0
        %1789 = vmatpush1.xpose.msra.mxu0 0.0
        %1790 = vmatprep.subr.mxu0 0.0
        %1791 = vmatpush1.xpose.msra.mxu0 0.0
        %1792 = vmatprep.subr.mxu0 0.0
        %1793 = vmatpush1.xpose.msra.mxu0 0.0
        %1794 = vmatprep.subr.mxu0 0.0
        %1795 = vmatpush1.xpose.msra.mxu0 0.0
        %1796 = vmatprep.mubr.f32.mxu0 0.0
        %1797 = vmatmul.mubr.f32.gmra.mrb[0].mxu0 %v1685
        %v1798 = vpop.f32.mrb[0].mxu0
        %v1799 = vadd.f32 0.0, %v1798
        %v1800 = vpop.f32.mrb[0].mxu0
        %1801 = vmatprep.mubr.f32.mxu0 0.0
        %1802 = vmatmul.mubr.f32.gmra.mrb[0].mxu0 %v1688
        %v1803 = vpop.f32.mrb[0].mxu0
        %v1804 = vadd.f32 0.0, %v1803
        %v1805 = vpop.f32.mrb[0].mxu0
        %1806 = vmatprep.mubr.f32.mxu0 0.0
        %1807 = vmatmul.mubr.f32.gmra.mrb[0].mxu0 %v1691
        %v1808 = vpop.f32.mrb[0].mxu0
        %v1809 = vadd.f32 0.0, %v1808
        %v1810 = vpop.f32.mrb[0].mxu0
        %1811 = vmatprep.mubr.f32.mxu0 0.0
        %1812 = vmatmul.mubr.f32.gmra.mrb[0].mxu0 %v1694
        %v1813 = vpop.f32.mrb[0].mxu0
        %v1814 = vadd.f32 0.0, %v1813
        %v1815 = vpop.f32.mrb[0].mxu0
        %1816 = vmatprep.mubr.f32.mxu0 0.0
        %1817 = vmatmul.mubr.f32.gmra.mrb[0].mxu0 %v1697
        %v1818 = vpop.f32.mrb[0].mxu0
        %v1819 = vadd.f32 0.0, %v1818
        %v1820 = vpop.f32.mrb[0].mxu0
        %1821 = vmatprep.mubr.f32.mxu0 0.0
        %1822 = vmatmul.mubr.f32.gmra.mrb[0].mxu0 %v1700
        %v1823 = vpop.f32.mrb[0].mxu0
        %v1824 = vadd.f32 0.0, %v1823
        %v1825 = vpop.f32.mrb[0].mxu0
        %1826 = vmatprep.mubr.f32.mxu0 0.0
        %1827 = vmatmul.mubr.f32.gmra.mrb[0].mxu0 %v1703
        %v1828 = vpop.f32.mrb[0].mxu0
        %v1829 = vadd.f32 0.0, %v1828
        %v1830 = vpop.f32.mrb[0].mxu0
        %1831 = vmatprep.mubr.f32.mxu0 0.0
        %1832 = vmatmul.mubr.f32.gmra.mrb[0].mxu0 %v1706
        %v1833 = vpop.f32.mrb[0].mxu0
        %v1834 = vadd.f32 0.0, %v1833
        %v1835 = vpop.f32.mrb[0].mxu0
        %1836 = vdwg.mxu0
        %vm1837 = vcmp.gt.f32.partialorder %v1799, 0.0
        %vm1838 = vcmp.gt.f32.partialorder %v1804, 0.0
        %vm1839 = vcmp.gt.f32.partialorder %v1809, 0.0
        %vm1840 = vcmp.gt.f32.partialorder %v1814, 0.0
        %vm1841 = vcmp.gt.f32.partialorder %v1819, 0.0
        %vm1842 = vcmp.gt.f32.partialorder %v1824, 0.0
        %vm1843 = vcmp.gt.f32.partialorder %v1829, 0.0
        %vm1844 = vcmp.gt.f32.partialorder %v1834, 0.0
        %v1845 = vmul.f32 %v1799, 0.2
        %v1846 = vmul.f32 %v1804, 0.2
        %v1847 = vmul.f32 %v1809, 0.2
        %v1848 = vmul.f32 %v1814, 0.2
        %v1849 = vmul.f32 %v1819, 0.2
        %v1850 = vmul.f32 %v1824, 0.2
        %v1851 = vmul.f32 %v1829, 0.2
        %v1852 = vmul.f32 %v1834, 0.2
        %v1853 = vsel %vm1837, %v1799, %v1845
        %v1854 = vsel %vm1838, %v1804, %v1846
        %v1855 = vsel %vm1839, %v1809, %v1847
        %v1856 = vsel %vm1840, %v1814, %v1848
        %v1857 = vsel %vm1841, %v1819, %v1849
        %v1858 = vsel %vm1842, %v1824, %v1850
        %v1859 = vsel %vm1843, %v1829, %v1851
        %v1860 = vsel %vm1844, %v1834, %v1852
        %v1861 = vsel %vm319, %v1853, -1e+09
        %v1862 = vsel %vm320, %v1854, -1e+09
        %v1863 = vsel %vm321, %v1855, -1e+09
        %v1864 = vsel %vm322, %v1856, -1e+09
        %v1865 = vsel %vm323, %v1857, -1e+09
        %v1866 = vsel %vm324, %v1858, -1e+09
        %v1867 = vsel %vm325, %v1859, -1e+09
        %v1868 = vsel %vm326, %v1860, -1e+09
        %v1869 = vsel %vm712, %v1861, -inf
        %1870 = vmax.xlane.f32.xlu0 %v1869
        %v1871 = vpop.xlane.xlu0 %1870
        %v1872 = vsel %vm712, %v1862, -inf
        %1873 = vmax.xlane.f32.xlu0 %v1872
        %v1874 = vpop.xlane.xlu0 %1873
        %v1875 = vsel %vm712, %v1863, -inf
        %1876 = vmax.xlane.f32.xlu0 %v1875
        %v1877 = vpop.xlane.xlu0 %1876
        %v1878 = vsel %vm712, %v1864, -inf
        %1879 = vmax.xlane.f32.xlu0 %v1878
        %v1880 = vpop.xlane.xlu0 %1879
        %v1881 = vsel %vm712, %v1865, -inf
        %1882 = vmax.xlane.f32.xlu0 %v1881
        %v1883 = vpop.xlane.xlu0 %1882
        %v1884 = vsel %vm712, %v1866, -inf
        %1885 = vmax.xlane.f32.xlu0 %v1884
        %v1886 = vpop.xlane.xlu0 %1885
        %v1887 = vsel %vm712, %v1867, -inf
        %1888 = vmax.xlane.f32.xlu0 %v1887
        %v1889 = vpop.xlane.xlu0 %1888
        %v1890 = vsel %vm712, %v1868, -inf
        %1891 = vmax.xlane.f32.xlu0 %v1890
        %v1892 = vpop.xlane.xlu0 %1891
        %v1893 = vsub.f32 %v1861, %v1871
        %v1894 = vsub.f32 %v1862, %v1874
        %v1895 = vsub.f32 %v1863, %v1877
        %v1896 = vsub.f32 %v1864, %v1880
        %v1897 = vsub.f32 %v1865, %v1883
        %v1898 = vsub.f32 %v1866, %v1886
        %v1899 = vsub.f32 %v1867, %v1889
        %v1900 = vsub.f32 %v1868, %v1892
        %v1901 = vmul.f32 %v1893, 1.442695
        %v1902 = vpow.pop %v1901
        %v1903 = vmul.f32 %v1894, 1.442695
        %v1904 = vpow.pop %v1903
        %v1905 = vmul.f32 %v1895, 1.442695
        %v1906 = vpow.pop %v1905
        %v1907 = vmul.f32 %v1896, 1.442695
        %v1908 = vpow.pop %v1907
        %v1909 = vmul.f32 %v1897, 1.442695
        %v1910 = vpow.pop %v1909
        %v1911 = vmul.f32 %v1898, 1.442695
        %v1912 = vpow.pop %v1911
        %v1913 = vmul.f32 %v1899, 1.442695
        %v1914 = vpow.pop %v1913
        %v1915 = vmul.f32 %v1900, 1.442695
        %v1916 = vpow.pop %v1915
        %v1917 = vsel %vm712, %v1902, 0.0
        %1918 = vadd.xlane.f32.xlu0 %v1917
        %v1919 = vpop.xlane.xlu0 %1918
        %v1920 = vsel %vm712, %v1904, 0.0
        %1921 = vadd.xlane.f32.xlu0 %v1920
        %v1922 = vpop.xlane.xlu0 %1921
        %v1923 = vsel %vm712, %v1906, 0.0
        %1924 = vadd.xlane.f32.xlu0 %v1923
        %v1925 = vpop.xlane.xlu0 %1924
        %v1926 = vsel %vm712, %v1908, 0.0
        %1927 = vadd.xlane.f32.xlu0 %v1926
        %v1928 = vpop.xlane.xlu0 %1927
        %v1929 = vsel %vm712, %v1910, 0.0
        %1930 = vadd.xlane.f32.xlu0 %v1929
        %v1931 = vpop.xlane.xlu0 %1930
        %v1932 = vsel %vm712, %v1912, 0.0
        %1933 = vadd.xlane.f32.xlu0 %v1932
        %v1934 = vpop.xlane.xlu0 %1933
        %v1935 = vsel %vm712, %v1914, 0.0
        %1936 = vadd.xlane.f32.xlu0 %v1935
        %v1937 = vpop.xlane.xlu0 %1936
        %v1938 = vsel %vm712, %v1916, 0.0
        %1939 = vadd.xlane.f32.xlu0 %v1938
        %v1940 = vpop.xlane.xlu0 %1939
        %v1941 = vpack.c.bf16 %v1904, %v1902
        %v1942 = vpack.c.bf16 %v1908, %v1906
        %v1943 = vpack.c.bf16 %v1912, %v1910
        %v1944 = vpack.c.bf16 %v1916, %v1914
        %v1945 = vpack.c.bf16 %v1585, %v1582
        %v1946 = vpack.c.bf16 %v1593, %v1590
        %v1947 = vpack.c.bf16 %v1601, %v1598
        %v1948 = vpack.c.bf16 %v1609, %v1606
        %v1950 = vsel %vm712, %v1941, 0
        %v1953 = vsel %vm712, %v1942, 0
        %v1956 = vsel %vm712, %v1943, 0
        %v1959 = vsel %vm712, %v1944, 0
        %1961 = vmatprep.subr.bf16.mxu0 0
        %1962 = vmatpush1.bf16.msra.mxu0 %v1945
        %1963 = vmatprep.subr.bf16.mxu0 0
        %1964 = vmatpush1.bf16.msra.mxu0 %v1946
        %1965 = vmatprep.subr.bf16.mxu0 0
        %1966 = vmatpush1.bf16.msra.mxu0 %v1947
        %1967 = vmatprep.subr.bf16.mxu0 0
        %1968 = vmatpush1.bf16.msra.mxu0 %v1948
        %1969 = vmatprep.subr.bf16.mxu0 0
        %1970 = vmatpush1.bf16.msra.mxu0 0
        %1971 = vmatprep.subr.bf16.mxu0 0
        %1972 = vmatpush1.bf16.msra.mxu0 0
        %1973 = vmatprep.subr.bf16.mxu0 0
        %1974 = vmatpush1.bf16.msra.mxu0 0
        %1975 = vmatprep.subr.bf16.mxu0 0
        %1976 = vmatpush1.bf16.msra.mxu0 0
        %1977 = vmatprep.subr.bf16.mxu0 0
        %1978 = vmatpush1.bf16.msra.mxu0 0
        %1979 = vmatprep.subr.bf16.mxu0 0
        %1980 = vmatpush1.bf16.msra.mxu0 0
        %1981 = vmatprep.subr.bf16.mxu0 0
        %1982 = vmatpush1.bf16.msra.mxu0 0
        %1983 = vmatprep.subr.bf16.mxu0 0
        %1984 = vmatpush1.bf16.msra.mxu0 0
        %1985 = vmatprep.subr.bf16.mxu0 0
        %1986 = vmatpush1.bf16.msra.mxu0 0
        %1987 = vmatprep.subr.bf16.mxu0 0
        %1988 = vmatpush1.bf16.msra.mxu0 0
        %1989 = vmatprep.subr.bf16.mxu0 0
        %1990 = vmatpush1.bf16.msra.mxu0 0
        %1991 = vmatprep.subr.bf16.mxu0 0
        %1992 = vmatpush1.bf16.msra.mxu0 0
        %1993 = vmatprep.mubr.bf16.mxu0 0
        %1994 = vmatmul.mubr.bf16.gmra.mrb[0].mxu0 %v1950
        %v1995 = vpop.f32.mrb[0].mxu0
        %v1996 = vadd.f32 0.0, %v1995
        %v1997 = vpop.f32.mrb[0].mxu0
        %v1998 = vpop.f32.mrb[0].mxu0
        %v1999 = vadd.f32 0.0, %v1998
        %v2000 = vpop.f32.mrb[0].mxu0
        %2001 = vmatprep.mubr.bf16.mxu0 0
        %2002 = vmatmul.mubr.bf16.gmra.mrb[0].mxu0 %v1953
        %v2003 = vpop.f32.mrb[0].mxu0
        %v2004 = vadd.f32 0.0, %v2003
        %v2005 = vpop.f32.mrb[0].mxu0
        %v2006 = vpop.f32.mrb[0].mxu0
        %v2007 = vadd.f32 0.0, %v2006
        %v2008 = vpop.f32.mrb[0].mxu0
        %2009 = vmatprep.mubr.bf16.mxu0 0
        %2010 = vmatmul.mubr.bf16.gmra.mrb[0].mxu0 %v1956
        %v2011 = vpop.f32.mrb[0].mxu0
        %v2012 = vadd.f32 0.0, %v2011
        %v2013 = vpop.f32.mrb[0].mxu0
        %v2014 = vpop.f32.mrb[0].mxu0
        %v2015 = vadd.f32 0.0, %v2014
        %v2016 = vpop.f32.mrb[0].mxu0
        %2017 = vmatprep.mubr.bf16.mxu0 0
        %2018 = vmatmul.mubr.bf16.gmra.mrb[0].mxu0 %v1959
        %v2019 = vpop.f32.mrb[0].mxu0
        %v2020 = vadd.f32 0.0, %v2019
        %v2021 = vpop.f32.mrb[0].mxu0
        %v2022 = vpop.f32.mrb[0].mxu0
        %v2023 = vadd.f32 0.0, %v2022
        %v2024 = vpop.f32.mrb[0].mxu0
        %2025 = vdwg.mxu0
        %v2026 = vrcp.pop %v1919
        %v2027 = vrcp.pop %v1922
        %v2028 = vrcp.pop %v1925
        %v2029 = vrcp.pop %v1928
        %v2030 = vrcp.pop %v1931
        %v2031 = vrcp.pop %v1934
        %v2032 = vrcp.pop %v1937
        %v2033 = vrcp.pop %v1940
        %v2034 = vmul.f32 %v1996, %v2026
        %v2035 = vmul.f32 %v1999, %v2027
        %v2036 = vmul.f32 %v2004, %v2028
        %v2037 = vmul.f32 %v2007, %v2029
        %v2038 = vmul.f32 %v2012, %v2030
        %v2039 = vmul.f32 %v2015, %v2031
        %v2040 = vmul.f32 %v2020, %v2032
        %v2041 = vmul.f32 %v2023, %v2033
        %v2042 = vld [vmem:[%s4 + $0x2] sm:$0x1]
        %v2043 = vlaneseq
        %v2044 = vshrl.u32 %v2043, 7
        %v2045 = vsub.s32 0, %v2044
        %v2046 = vrot.slane %v2042, %v2045
        %v2047 = vadd.f32 %v2034, %v2046
        %v2048 = vadd.f32 %v2035, %v2046
        %v2049 = vadd.f32 %v2036, %v2046
        %v2050 = vadd.f32 %v2037, %v2046
        %v2051 = vadd.f32 %v2038, %v2046
        %v2052 = vadd.f32 %v2039, %v2046
        %v2053 = vadd.f32 %v2040, %v2046
        %v2054 = vadd.f32 %v2041, %v2046
        %v2055 = vmax.f32 %v2047, 0.0
        %v2056 = vmax.f32 %v2048, 0.0
        %v2057 = vmax.f32 %v2049, 0.0
        %v2058 = vmax.f32 %v2050, 0.0
        %v2059 = vmax.f32 %v2051, 0.0
        %v2060 = vmax.f32 %v2052, 0.0
        %v2061 = vmax.f32 %v2053, 0.0
        %v2062 = vmax.f32 %v2054, 0.0
        %v2063 = vpack.c.bf16 %v2056, %v2055
        %v2064 = vpack.c.bf16 %v2058, %v2057
        %v2065 = vpack.c.bf16 %v2060, %v2059
        %v2066 = vpack.c.bf16 %v2062, %v2061
        %v2067 = vld [vmem:[#allocation4 + $0x90] sm:$0xff]
        %v2068 = vld [vmem:[#allocation4 + $0x98] sm:$0xff]
        %v2069 = vld [vmem:[#allocation4 + $0xa0] sm:$0xff]
        %v2070 = vld [vmem:[#allocation4 + $0xa8] sm:$0xff]
        %v2071 = vld [vmem:[#allocation4 + $0xb0] sm:$0xff]
        %v2072 = vld [vmem:[#allocation4 + $0xb8] sm:$0xff]
        %v2073 = vld [vmem:[#allocation4 + $0xc0] sm:$0xff]
        %v2074 = vld [vmem:[#allocation4 + $0xc8] sm:$0xff]
        %v2083 = vunpack.c.l.b16 %v2067
        %v2084 = vunpack.c.h.b16 %v2067
        %v2085 = vunpack.c.l.b16 %v2068
        %v2086 = vunpack.c.h.b16 %v2068
        %v2087 = vunpack.c.l.b16 %v2069
        %v2088 = vunpack.c.h.b16 %v2069
        %v2089 = vunpack.c.l.b16 %v2070
        %v2090 = vunpack.c.h.b16 %v2070
        %v2091 = vunpack.c.l.b16 %v2071
        %v2092 = vunpack.c.h.b16 %v2071
        %v2093 = vunpack.c.l.b16 %v2072
        %v2094 = vunpack.c.h.b16 %v2072
        %v2095 = vunpack.c.l.b16 %v2073
        %v2096 = vunpack.c.h.b16 %v2073
        %v2097 = vunpack.c.l.b16 %v2074
        %v2098 = vunpack.c.h.b16 %v2074
        %v2099 = vpack.c.b16 %v2085, %v2083
        %v2100 = vpack.c.b16 %v2086, %v2084
        %v2101 = vpack.c.b16 %v2089, %v2087
        %v2102 = vpack.c.b16 %v2090, %v2088
        %v2103 = vpack.c.b16 %v2093, %v2091
        %v2104 = vpack.c.b16 %v2094, %v2092
        %v2105 = vpack.c.b16 %v2097, %v2095
        %v2106 = vpack.c.b16 %v2098, %v2096
        %v2116 = vsel %vm712, %v2063, 0
        %v2119 = vsel %vm712, %v2064, 0
        %v2122 = vsel %vm712, %v2065, 0
        %v2125 = vsel %vm712, %v2066, 0
        %2127 = vmatprep.subr.bf16.mxu0 %v2100
        %2128 = vmatpush1.bf16.msra.mxu0 %v2099
        %2129 = vmatprep.subr.bf16.mxu0 %v2102
        %2130 = vmatpush1.bf16.msra.mxu0 %v2101
        %2131 = vmatprep.subr.bf16.mxu0 %v2104
        %2132 = vmatpush1.bf16.msra.mxu0 %v2103
        %2133 = vmatprep.subr.bf16.mxu0 %v2106
        %2134 = vmatpush1.bf16.msra.mxu0 %v2105
        %2135 = vmatprep.subr.bf16.mxu0 0
        %2136 = vmatpush1.bf16.msra.mxu0 0
        %2137 = vmatprep.subr.bf16.mxu0 0
        %2138 = vmatpush1.bf16.msra.mxu0 0
        %2139 = vmatprep.subr.bf16.mxu0 0
        %2140 = vmatpush1.bf16.msra.mxu0 0
        %2141 = vmatprep.subr.bf16.mxu0 0
        %2142 = vmatpush1.bf16.msra.mxu0 0
        %2143 = vmatprep.subr.bf16.mxu0 0
        %2144 = vmatpush1.bf16.msra.mxu0 0
        %2145 = vmatprep.subr.bf16.mxu0 0
        %2146 = vmatpush1.bf16.msra.mxu0 0
        %2147 = vmatprep.subr.bf16.mxu0 0
        %2148 = vmatpush1.bf16.msra.mxu0 0
        %2149 = vmatprep.subr.bf16.mxu0 0
        %2150 = vmatpush1.bf16.msra.mxu0 0
        %2151 = vmatprep.subr.bf16.mxu0 0
        %2152 = vmatpush1.bf16.msra.mxu0 0
        %2153 = vmatprep.subr.bf16.mxu0 0
        %2154 = vmatpush1.bf16.msra.mxu0 0
        %2155 = vmatprep.subr.bf16.mxu0 0
        %2156 = vmatpush1.bf16.msra.mxu0 0
        %2157 = vmatprep.subr.bf16.mxu0 0
        %2158 = vmatpush1.bf16.msra.mxu0 0
        %2159 = vmatprep.mubr.bf16.mxu0 0
        %2160 = vmatmul.mubr.bf16.gmra.mrb[0].mxu0 %v2116
        %v2161 = vpop.f32.mrb[0].mxu0
        %v2162 = vadd.f32 0.0, %v2161
        %v2163 = vpop.f32.mrb[0].mxu0
        %v2164 = vpop.f32.mrb[0].mxu0
        %v2165 = vadd.f32 0.0, %v2164
        %v2166 = vpop.f32.mrb[0].mxu0
        %2167 = vmatprep.mubr.bf16.mxu0 0
        %2168 = vmatmul.mubr.bf16.gmra.mrb[0].mxu0 %v2119
        %v2169 = vpop.f32.mrb[0].mxu0
        %v2170 = vadd.f32 0.0, %v2169
        %v2171 = vpop.f32.mrb[0].mxu0
        %v2172 = vpop.f32.mrb[0].mxu0
        %v2173 = vadd.f32 0.0, %v2172
        %v2174 = vpop.f32.mrb[0].mxu0
        %2175 = vmatprep.mubr.bf16.mxu0 0
        %2176 = vmatmul.mubr.bf16.gmra.mrb[0].mxu0 %v2122
        %v2177 = vpop.f32.mrb[0].mxu0
        %v2178 = vadd.f32 0.0, %v2177
        %v2179 = vpop.f32.mrb[0].mxu0
        %v2180 = vpop.f32.mrb[0].mxu0
        %v2181 = vadd.f32 0.0, %v2180
        %v2182 = vpop.f32.mrb[0].mxu0
        %2183 = vmatprep.mubr.bf16.mxu0 0
        %2184 = vmatmul.mubr.bf16.gmra.mrb[0].mxu0 %v2125
        %v2185 = vpop.f32.mrb[0].mxu0
        %v2186 = vadd.f32 0.0, %v2185
        %v2187 = vpop.f32.mrb[0].mxu0
        %v2188 = vpop.f32.mrb[0].mxu0
        %v2189 = vadd.f32 0.0, %v2188
        %v2190 = vpop.f32.mrb[0].mxu0
        %2191 = vdwg.mxu0
        %v2192 = vld [vmem:[%s4 + $0x3] sm:$0x1]
        %v2193 = vlaneseq
        %v2194 = vshrl.u32 %v2193, 7
        %v2195 = vsub.s32 0, %v2194
        %v2196 = vrot.slane %v2192, %v2195
        %v2197 = vadd.f32 %v2162, %v2196
        %v2198 = vadd.f32 %v2165, %v2196
        %v2199 = vadd.f32 %v2170, %v2196
        %v2200 = vadd.f32 %v2173, %v2196
        %v2201 = vadd.f32 %v2178, %v2196
        %v2202 = vadd.f32 %v2181, %v2196
        %v2203 = vadd.f32 %v2186, %v2196
        %v2204 = vadd.f32 %v2189, %v2196
        %2205 = vst [vmem:[%s299] sm:$0xff] %v2197
        %2206 = vst [vmem:[%s299 + $0x8] sm:$0xff] %v2198
        %2207 = vst [vmem:[%s299 + $0x10] sm:$0xff] %v2199
        %2208 = vst [vmem:[%s299 + $0x18] sm:$0xff] %v2200
        %2209 = vst [vmem:[%s299 + $0x20] sm:$0xff] %v2201
        %2210 = vst [vmem:[%s299 + $0x28] sm:$0xff] %v2202
        %2211 = vst [vmem:[%s299 + $0x30] sm:$0xff] %v2203
        %2212 = vst [vmem:[%s299 + $0x38] sm:$0xff] %v2204
        %p2213 = scmp.lt.s32.totalorder %s20, 1
        %s2214 = scalar_select %p2213, %s20, 1
        %s2215 = smul.addr %s2214, 8
        %s2216 = smul.addr %s2215, 8
        %s2217 = scalar_lea.vmem %s5, %s2216
        // Predicated region
        $region49: #{gat_forward.1} parent=39 // pred_check
          %p2218 = pneg %p158
        $region50: #{gat_forward.1} parent=39 // pred_check_branch
          %2220 = sbr.rel (%p2218) target = $region52
        $region51: #{gat_forward.1} parent=39 // pred_region
          _
        $region52: #{gat_forward.1} parent=39 // pred_fallthru
          _
      $region40: #{gat_forward.1} parent=5 // pred_fallthru
        _
      %p2221 = scmp.le.s32.totalorder 2, %s15
      // Predicated region
      $region53: #{gat_forward.1} parent=5 // pred_check
        %p2222 = pneg %p2221
      $region54: #{gat_forward.1} parent=5 // pred_check_branch
        %2224 = sbr.rel (%p2222) target = $region56
      $region55: #{gat_forward.1} parent=5 // pred_region
        %s2225 = ssub.s32 %s15, 2
        // Predicated region
        $region57: #{gat_forward.1} parent=55 // pred_check
          %p2226 = pneg %p164
        $region58: #{gat_forward.1} parent=55 // pred_check_branch
          %2228 = sbr.rel (%p2226) target = $region60
        $region59: #{gat_forward.1} parent=55 // pred_region
          %p2229 = scmp.lt.s32.totalorder %s21, 1
          %s2230 = scalar_select %p2229, %s21, 1
          %s2231 = smul.addr %s2230, 8
          %s2232 = smul.addr %s2231, 8
          %s2233 = scalar_lea.vmem %s5, %s2232
        $region60: #{gat_forward.1} parent=55 // pred_fallthru
          _
      $region56: #{gat_forward.1} parent=5 // pred_fallthru
        _
    $region6: #{gat_forward.1} parent=1 // loop_footer
      %s19 = sadd.s32 1, %s15
    $region7: #{gat_forward.1} parent=1 // loop_footer_branch
      %14 = sbr.rel target = $region3
    $region8: #{gat_forward.1} parent=1 // loop_exit
      _
    %2234 = vsyncpa [#allocation3], 1
    %s2235 = scalar_lea.sflag [#allocation3], 1
    %2236 = vsyncpa %s2235, 1
    %2237 = vsyncpa [#allocation5], 1

</llo_original>
